<compile_context>
chip_gen: v7x
topology: tpu7x:2x2x1
jax: 0.10.0
libtpu: 0.0.40
codegen_flags: <defaults>
</compile_context>

<pallas_src>
import functools

import jax
import jax.numpy as jnp
from jax.experimental import pallas as pl
from jax.experimental.pallas import tpu as pltpu


_VMEM_LIMIT = 32 * 1024 * 1024            # safe scoped-VMEM limit on v5e/v6e/v7x
_XW_RESIDENT_MAX_BYTES = 8 * 1024 * 1024  # keep full XW VMEM-resident below this


def _round_up(x, m):
    return ((x + m - 1) // m) * m


# ----------------------------- Pallas kernels ------------------------------ #

def _xw_kernel(x_ref, w_ref, o_ref):
    # XW = X @ W (FS scaling pre-folded into W on the host).
    # bf16 MXU inputs, f32 accumulation, bf16 output for the next MXU stage.
    acc = jnp.dot(x_ref[...], w_ref[...], preferred_element_type=jnp.float32)
    o_ref[...] = acc.astype(o_ref.dtype)


def _agg_out_kernel(adj_ref, xw_ref, b_ref, wo_ref, bo_ref, o_ref, acc_ref,
                    *, tk, xw_resident):
    # out = relu(adj @ XW + b) @ Wout_pad + bout_pad
    # Grid = (row tiles, K tiles over adjacency columns); K is the inner
    # ("arbitrary") axis, accumulated in an f32 VMEM scratch (pl.when init /
    # finalize). The (N, H) activation never round-trips through HBM.
    k = pl.program_id(1)

    @pl.when(k == 0)
    def _():
        acc_ref[...] = jnp.zeros_like(acc_ref)

    if xw_resident:
        # XW block index is constant across the grid -> DMA'd from HBM exactly
        # once; slice the current K chunk in-kernel (start is 128-aligned).
        start = pl.multiple_of(k * tk, 128)
        xw_blk = xw_ref[pl.ds(start, tk), :]
    else:
        xw_blk = xw_ref[...]

    acc_ref[...] += jnp.dot(adj_ref[...], xw_blk,
                            preferred_element_type=jnp.float32)

    @pl.when(k == pl.num_programs(1) - 1)
    def _():
        h = jnp.maximum(acc_ref[...] + b_ref[...], 0.0)   # relu; dropout = id
        # Fused nn.Linear head: bf16 operands on the MXU, f32 accumulation;
        # Cp is a multiple of 128 so the store is lane-dense.
        o_ref[...] = (
            jnp.dot(h.astype(jnp.bfloat16), wo_ref[...],
                    preferred_element_type=jnp.float32)
            + bo_ref[...]
        )


# ------------------------------ Host wrappers ------------------------------ #

def xw_matmul(x_bf16, w_bf16, *, tn=1024):
    """XW = X @ W_scaled, computed once per layer (bf16 out for the MXU)."""
    N, F = x_bf16.shape
    H = w_bf16.shape[1]
    tn = min(tn, N)
    if tn < N:
        tn = max(8, (tn // 8) * 8)
    # TODO(synk): if nfeat (F) can be very large, add a K grid axis over F with
    #             its own accumulator instead of holding full (tn,F)/(F,H) blocks.
    return pl.pallas_call(
        _xw_kernel,
        out_shape=jax.ShapeDtypeStruct((N, H), jnp.bfloat16),
        grid_spec=pltpu.PrefetchScalarGridSpec(
            num_scalar_prefetch=0,
            grid=(pl.cdiv(N, tn),),
            in_specs=[
                pl.BlockSpec((tn, F), lambda i: (i, 0)),
                pl.BlockSpec((F, H), lambda i: (0, 0)),
            ],
            out_specs=pl.BlockSpec((tn, H), lambda i: (i, 0)),
        ),
        compiler_params=pltpu.CompilerParams(
            dimension_semantics=("parallel",),
            vmem_limit_bytes=_VMEM_LIMIT),
    )(x_bf16, w_bf16)


def gcn_aggregate_out(adj_bf16, xw_bf16, b, wo_pad_bf16, bo_pad, *,
                      tn=1024, tk=2048):
    """(relu(adj @ XW + b)) @ Wout_pad + bout_pad, K-tiled with f32 accumulator."""
    N, Nk = adj_bf16.shape
    H = xw_bf16.shape[1]
    Cp = wo_pad_bf16.shape[1]

    # Row tiles: pl.cdiv handles a ragged last block.  (On v7x pick tn so there
    # are >= 2 row tiles -- the "parallel" axis is what gets sharded across the
    # two TensorCores.)
    tn = min(tn, N)
    if tn < N:
        tn = max(8, (tn // 8) * 8)

    # K tiles: force tk to a multiple of 128 and zero-pad adjacency columns /
    # XW rows so nk_pad % tk == 0 (zero columns contribute nothing).
    tk = max(128, (min(tk, _round_up(Nk, 128)) // 128) * 128)
    nk_pad = _round_up(Nk, tk)
    if nk_pad != Nk:
        adj_bf16 = jnp.pad(adj_bf16, ((0, 0), (0, nk_pad - Nk)))
        xw_bf16 = jnp.pad(xw_bf16, ((0, nk_pad - Nk), (0, 0)))

    # Keep the whole XW operand VMEM-resident when it fits: constant index_map
    # means it is fetched from HBM once instead of once per row tile.
    xw_resident = nk_pad * H * 2 <= _XW_RESIDENT_MAX_BYTES
    if xw_resident:
        xw_spec = pl.BlockSpec((nk_pad, H), lambda i, k: (0, 0))
    else:
        xw_spec = pl.BlockSpec((tk, H), lambda i, k: (k, 0))

    kernel = functools.partial(_agg_out_kernel, tk=tk, xw_resident=xw_resident)

    # TODO(synk): per-generation adjacency quantization (int8 on v5e/v6e, fp8 on
    #             v7x) would roughly halve the dominant N^2 HBM stream.
    return pl.pallas_call(
        kernel,
        out_shape=jax.ShapeDtypeStruct((N, Cp), jnp.float32),
        grid_spec=pltpu.PrefetchScalarGridSpec(
            num_scalar_prefetch=0,
            grid=(pl.cdiv(N, tn), nk_pad // tk),
            in_specs=[
                pl.BlockSpec((tn, tk), lambda i, k: (i, k)),
                xw_spec,
                pl.BlockSpec((1, H), lambda i, k: (0, 0)),
                pl.BlockSpec((H, Cp), lambda i, k: (0, 0)),
                pl.BlockSpec((1, Cp), lambda i, k: (0, 0)),
            ],
            out_specs=pl.BlockSpec((tn, Cp), lambda i, k: (i, 0)),
            scratch_shapes=[pltpu.VMEM((tn, H), jnp.float32)],
        ),
        compiler_params=pltpu.CompilerParams(
            dimension_semantics=("parallel", "arbitrary"),
            vmem_limit_bytes=_VMEM_LIMIT),
    )(adj_bf16, xw_bf16, b.reshape(1, H), wo_pad_bf16, bo_pad.reshape(1, Cp))


# ------------------------------ Forward pass -------------------------------- #

def prepare_params(fs_w, gc_w, gc_b, out_w, out_b):
    """Fold FS scaling into the GCN weights; bf16 + lane-pad the output linear."""
    nhid = out_w.shape[1]
    C = out_w.shape[0]
    Cp = _round_up(C, 128)
    return {
        # (X * w_fs) @ W == X @ (w_fs[:, None] * W)
        "gc_w_fs": [(fs_w[:, None] * w).astype(jnp.bfloat16) for w in gc_w],
        "gc_b": [b.astype(jnp.float32) for b in gc_b],
        # nn.Linear weight is (C, H) -> transpose, pad lanes to 128, store bf16.
        "out_w_pad": jnp.zeros((nhid, Cp), jnp.bfloat16).at[:, :C].set(
            out_w.T.astype(jnp.bfloat16)),
        "out_b_pad": jnp.zeros((Cp,), jnp.float32).at[:C].set(out_b),
    }


@functools.partial(jax.jit, static_argnames=("num_classes", "tn", "tk"))
def gcn_second_forward(X, adjs, params, *, num_classes, tn=1024, tk=2048):
    """Reproduces GCN_second.forward.  In the reference, every GraphConvolution
    consumes the FS output X and only the LAST layer's activation reaches
    gc_out, so the intermediate layers are dead code -- skip them outright
    (identical output, no useless pallas_calls compiled)."""
    X_bf16 = X.astype(jnp.bfloat16)
    last = len(params["gc_w_fs"]) - 1
    xw = xw_matmul(X_bf16, params["gc_w_fs"][last], tn=tn)
    out = gcn_aggregate_out(adjs[last].astype(jnp.bfloat16), xw,
                            params["gc_b"][last],
                            params["out_w_pad"], params["out_b_pad"],
                            tn=tn, tk=tk)
    return out[:, :num_classes]


# ----------------------------------- Main ----------------------------------- #

if __name__ == "__main__":
    # Small demo shapes; nfeat == nhid so the reference forward (which feeds the
    # FS output X to every GraphConvolution) is shape-consistent for layers > 1.
    N, nfeat, nhid, num_classes, layers = 256, 128, 128, 8, 2
    tn, tk = 128, 128   # small tiles so both grid axes have >1 step in the demo

    key = jax.random.PRNGKey(0)
    k_x, k_adj, k_fs, k_w, k_b, k_ow, k_ob = jax.random.split(key, 7)

    X = jax.random.normal(k_x, (N, nfeat), dtype=jnp.float32)

    # Dense, row-normalized non-negative adjacency per layer (stand-in for the
    # torch.sparse_coo_tensor stack of shape (layers, N, N)).
    adj_raw = jax.random.uniform(k_adj, (layers, N, N), dtype=jnp.float32)
    adjs = adj_raw / jnp.sum(adj_raw, axis=-1, keepdims=True)

    # Deterministic synthetic parameters.
    fs_w = jax.random.uniform(k_fs, (nfeat,), dtype=jnp.float32)

    wkeys = jax.random.split(k_w, layers)
    bkeys = jax.random.split(k_b, layers)
    gc_w, gc_b = [], []
    dims = [(nfeat, nhid)] + [(nhid, nhid)] * (layers - 1)
    for ell, (din, dout) in enumerate(dims):
        scale = 1.0 / jnp.sqrt(jnp.float32(din))
        gc_w.append(scale * jax.random.normal(wkeys[ell], (din, dout), jnp.float32))
        gc_b.append(scale * jax.random.normal(bkeys[ell], (dout,), jnp.float32))

    out_scale = 1.0 / jnp.sqrt(jnp.float32(nhid))
    # nn.Linear(nhid, num_classes): weight is (C, H).
    out_w = out_scale * jax.random.normal(k_ow, (num_classes, nhid), jnp.float32)
    out_b = out_scale * jax.random.normal(k_ob, (num_classes,), jnp.float32)

    params = prepare_params(fs_w, gc_w, gc_b, out_w, out_b)

    out = gcn_second_forward(X, adjs, params,
                             num_classes=num_classes, tn=tn, tk=tk)
    out = jax.block_until_ready(out)

    # Pure-JAX reference with the same bf16 casts (f32 accumulation everywhere).
    # Only the last layer's activation reaches gc_out in the reference forward.
    hp = jax.lax.Precision.HIGHEST
    f32 = jnp.float32
    last = layers - 1
    Xb = X.astype(jnp.bfloat16).astype(f32)
    Ws = (fs_w[:, None] * gc_w[last]).astype(jnp.bfloat16).astype(f32)
    xw_ref = jnp.dot(Xb, Ws, precision=hp).astype(jnp.bfloat16).astype(f32)
    adj_b = adjs[last].astype(jnp.bfloat16).astype(f32)
    h_ref = jnp.maximum(jnp.dot(adj_b, xw_ref, precision=hp)
                        + gc_b[last][None, :], 0.0)
    w_out_b = out_w.T.astype(jnp.bfloat16).astype(f32)
    ref = (jnp.dot(h_ref.astype(jnp.bfloat16).astype(f32), w_out_b, precision=hp)
           + out_b[None, :])

    assert out.shape == (N, num_classes)
    assert jnp.allclose(out, ref, atol=1e-2, rtol=1e-2), (
        float(jnp.max(jnp.abs(out - ref))))

    print("KERNEL_OK")
</pallas_src>

<mosaic_0001>
module attributes {stable_mosaic.version = 11 : i64} {
  func.func @_xw_kernel(%arg0: i32, %arg1: memref<128x128xbf16, #tpu.memory_space<vmem>>, %arg2: memref<128x128xbf16, #tpu.memory_space<vmem>>, %arg3: memref<128x128xbf16, #tpu.memory_space<vmem>>) attributes {dimension_semantics = [#tpu.dimension_semantics<parallel>], iteration_bounds = array<i64: 2>, scalar_prefetch = 0 : i64, scratch_operands = 0 : i64, tpu.core_type = #tpu.core_type<tc>, window_params = [{transform_indices = @transform_0, window_bounds = array<i64: 128, 128>}, {pipeline_mode = #tpu.pipeline_mode<synchronous>, transform_indices = @transform_1, window_bounds = array<i64: 128, 128>}, {transform_indices = @transform_2, window_bounds = array<i64: 128, 128>}]} {
    %c0 = arith.constant 0 : index
    %c0_0 = arith.constant 0 : index
    %0 = vector.load %arg1[%c0, %c0_0] : memref<128x128xbf16, #tpu.memory_space<vmem>>, vector<128x128xbf16>
    %c0_1 = arith.constant 0 : index
    %c0_2 = arith.constant 0 : index
    %1 = vector.load %arg2[%c0_1, %c0_2] : memref<128x128xbf16, #tpu.memory_space<vmem>>, vector<128x128xbf16>
    %cst = arith.constant dense<0.000000e+00> : vector<128x128xf32>
    %2 = tpu.matmul %0, %1, %cst {dimension_numbers = #tpu.dot_dimension_numbers<[1], [0], [0], [1], [0, 0, 1, 1], [], []>} : vector<128x128xbf16>, vector<128x128xbf16>, vector<128x128xf32> -> vector<128x128xf32>
    %3 = arith.truncf %2 : vector<128x128xf32> to vector<128x128xbf16>
    %c0_3 = arith.constant 0 : index
    %c0_4 = arith.constant 0 : index
    %4 = vector.load %arg3[%c0_3, %c0_4] : memref<128x128xbf16, #tpu.memory_space<vmem>>, vector<128x128xbf16>
    tpu.vector_store %arg3[%c0_3, %c0_4], %3 {strides = array<i32>} : memref<128x128xbf16, #tpu.memory_space<vmem>>, vector<128x128xbf16>,
    return
  }
  func.func @transform_0(%arg0: i32) -> (i32, i32) {
    %c0_i32 = arith.constant 0 : i32
    %c0_i32_0 = arith.constant 0 : i32
    return %arg0, %c0_i32 : i32, i32
  }
  func.func @transform_1(%arg0: i32) -> (i32, i32) {
    %c0_i32 = arith.constant 0 : i32
    %c0_i32_0 = arith.constant 0 : i32
    %c0_i32_1 = arith.constant 0 : i32
    return %c0_i32, %c0_i32_0 : i32, i32
  }
  func.func @transform_2(%arg0: i32) -> (i32, i32) {
    %c0_i32 = arith.constant 0 : i32
    %c0_i32_0 = arith.constant 0 : i32
    return %arg0, %c0_i32 : i32, i32
  }
}

module attributes {stable_mosaic.version = 11 : i64} {
  func.func @_agg_out_kernel(%arg0: i32, %arg1: i32, %arg2: memref<128x128xbf16, #tpu.memory_space<vmem>>, %arg3: memref<256x128xbf16, #tpu.memory_space<vmem>>, %arg4: memref<1x128xf32, #tpu.memory_space<vmem>>, %arg5: memref<128x128xbf16, #tpu.memory_space<vmem>>, %arg6: memref<1x128xf32, #tpu.memory_space<vmem>>, %arg7: memref<128x128xf32, #tpu.memory_space<vmem>>, %arg8: memref<128x128xf32, #tpu.memory_space<vmem>>) attributes {dimension_semantics = [#tpu.dimension_semantics<parallel>, #tpu.dimension_semantics<arbitrary>], iteration_bounds = array<i64: 2, 2>, scalar_prefetch = 0 : i64, scratch_operands = 1 : i64, tpu.core_type = #tpu.core_type<tc>, window_params = [{transform_indices = @transform_0, window_bounds = array<i64: 128, 128>}, {pipeline_mode = #tpu.pipeline_mode<synchronous>, transform_indices = @transform_1, window_bounds = array<i64: 256, 128>}, {pipeline_mode = #tpu.pipeline_mode<synchronous>, transform_indices = @transform_2, window_bounds = array<i64: 1, 128>}, {pipeline_mode = #tpu.pipeline_mode<synchronous>, transform_indices = @transform_3, window_bounds = array<i64: 128, 128>}, {pipeline_mode = #tpu.pipeline_mode<synchronous>, transform_indices = @transform_4, window_bounds = array<i64: 1, 128>}, {transform_indices = @transform_5, window_bounds = array<i64: 128, 128>}]} {
    %c0_i32 = arith.constant 0 : i32
    %0 = arith.cmpi eq, %arg1, %c0_i32 : i32
    %1 = arith.extui %0 : i1 to i32
    %c0_i32_0 = arith.constant 0 : i32
    %2 = arith.cmpi ne, %1, %c0_i32_0 : i32
    scf.if %2 {
      %cst_8 = arith.constant 0.000000e+00 : f32
      %15 = vector.broadcast %cst_8 : f32 to vector<128x128xf32>
      %c0_9 = arith.constant 0 : index
      %c0_10 = arith.constant 0 : index
      %16 = vector.load %arg8[%c0_9, %c0_10] : memref<128x128xf32, #tpu.memory_space<vmem>>, vector<128x128xf32>
      tpu.vector_store %arg8[%c0_9, %c0_10], %15 {strides = array<i32>} : memref<128x128xf32, #tpu.memory_space<vmem>>, vector<128x128xf32>,
    } else {
    }
    %c128_i32 = arith.constant 128 : i32
    %3 = arith.muli %arg1, %c128_i32 : i32
    %4 = tpu.assume_multiple %3, 128 : i32
    %5 = arith.index_cast %4 : i32 to index
    %c0 = arith.constant 0 : index
    %6 = vector.load %arg3[%5, %c0] : memref<256x128xbf16, #tpu.memory_space<vmem>>, vector<128x128xbf16>
    %c0_1 = arith.constant 0 : index
    %c0_2 = arith.constant 0 : index
    %7 = vector.load %arg8[%c0_1, %c0_2] : memref<128x128xf32, #tpu.memory_space<vmem>>, vector<128x128xf32>
    %c0_3 = arith.constant 0 : index
    %c0_4 = arith.constant 0 : index
    %8 = vector.load %arg2[%c0_3, %c0_4] : memref<128x128xbf16, #tpu.memory_space<vmem>>, vector<128x128xbf16>
    %cst = arith.constant dense<0.000000e+00> : vector<128x128xf32>
    %9 = tpu.matmul %8, %6, %cst {dimension_numbers = #tpu.dot_dimension_numbers<[1], [0], [0], [1], [0, 0, 1, 1], [], []>} : vector<128x128xbf16>, vector<128x128xbf16>, vector<128x128xf32> -> vector<128x128xf32>
    %10 = arith.addf %7, %9 : vector<128x128xf32>
    %c0_5 = arith.constant 0 : index
    %c0_6 = arith.constant 0 : index
    %11 = vector.load %arg8[%c0_5, %c0_6] : memref<128x128xf32, #tpu.memory_space<vmem>>, vector<128x128xf32>
    tpu.vector_store %arg8[%c0_5, %c0_6], %10 {strides = array<i32>} : memref<128x128xf32, #tpu.memory_space<vmem>>, vector<128x128xf32>,
    %c1_i32 = arith.constant 1 : i32
    %12 = arith.cmpi eq, %arg1, %c1_i32 : i32
    %13 = arith.extui %12 : i1 to i32
    %c0_i32_7 = arith.constant 0 : i32
    %14 = arith.cmpi ne, %13, %c0_i32_7 : i32
    scf.if %14 {
      %c0_8 = arith.constant 0 : index
      %c0_9 = arith.constant 0 : index
      %15 = vector.load %arg8[%c0_8, %c0_9] : memref<128x128xf32, #tpu.memory_space<vmem>>, vector<128x128xf32>
      %c0_10 = arith.constant 0 : index
      %c0_11 = arith.constant 0 : index
      %16 = vector.load %arg4[%c0_10, %c0_11] : memref<1x128xf32, #tpu.memory_space<vmem>>, vector<1x128xf32>
      %17 = vector.broadcast %16 : vector<1x128xf32> to vector<128x128xf32>
      %18 = arith.addf %15, %17 : vector<128x128xf32>
      %cst_12 = arith.constant 0.000000e+00 : f32
      %19 = vector.broadcast %cst_12 : f32 to vector<128x128xf32>
      %20 = arith.maximumf %18, %19 : vector<128x128xf32>
      %21 = arith.truncf %20 : vector<128x128xf32> to vector<128x128xbf16>
      %c0_13 = arith.constant 0 : index
      %c0_14 = arith.constant 0 : index
      %22 = vector.load %arg5[%c0_13, %c0_14] : memref<128x128xbf16, #tpu.memory_space<vmem>>, vector<128x128xbf16>
      %cst_15 = arith.constant dense<0.000000e+00> : vector<128x128xf32>
      %23 = tpu.matmul %21, %22, %cst_15 {dimension_numbers = #tpu.dot_dimension_numbers<[1], [0], [0], [1], [0, 0, 1, 1], [], []>} : vector<128x128xbf16>, vector<128x128xbf16>, vector<128x128xf32> -> vector<128x128xf32>
      %c0_16 = arith.constant 0 : index
      %c0_17 = arith.constant 0 : index
      %24 = vector.load %arg6[%c0_16, %c0_17] : memref<1x128xf32, #tpu.memory_space<vmem>>, vector<1x128xf32>
      %25 = vector.broadcast %24 : vector<1x128xf32> to vector<128x128xf32>
      %26 = arith.addf %23, %25 : vector<128x128xf32>
      %c0_18 = arith.constant 0 : index
      %c0_19 = arith.constant 0 : index
      %27 = vector.load %arg7[%c0_18, %c0_19] : memref<128x128xf32, #tpu.memory_space<vmem>>, vector<128x128xf32>
      tpu.vector_store %arg7[%c0_18, %c0_19], %26 {strides = array<i32>} : memref<128x128xf32, #tpu.memory_space<vmem>>, vector<128x128xf32>,
    } else {
    }
    return
  }
  func.func @transform_0(%arg0: i32, %arg1: i32) -> (i32, i32) {
    %c0_i32 = arith.constant 0 : i32
    return %arg0, %arg1 : i32, i32
  }
  func.func @transform_1(%arg0: i32, %arg1: i32) -> (i32, i32) {
    %c0_i32 = arith.constant 0 : i32
    %c0_i32_0 = arith.constant 0 : i32
    %c0_i32_1 = arith.constant 0 : i32
    return %c0_i32, %c0_i32_0 : i32, i32
  }
  func.func @transform_2(%arg0: i32, %arg1: i32) -> (i32, i32) {
    %c0_i32 = arith.constant 0 : i32
    %c0_i32_0 = arith.constant 0 : i32
    %c0_i32_1 = arith.constant 0 : i32
    return %c0_i32, %c0_i32_0 : i32, i32
  }
  func.func @transform_3(%arg0: i32, %arg1: i32) -> (i32, i32) {
    %c0_i32 = arith.constant 0 : i32
    %c0_i32_0 = arith.constant 0 : i32
    %c0_i32_1 = arith.constant 0 : i32
    return %c0_i32, %c0_i32_0 : i32, i32
  }
  func.func @transform_4(%arg0: i32, %arg1: i32) -> (i32, i32) {
    %c0_i32 = arith.constant 0 : i32
    %c0_i32_0 = arith.constant 0 : i32
    %c0_i32_1 = arith.constant 0 : i32
    return %c0_i32, %c0_i32_0 : i32, i32
  }
  func.func @transform_5(%arg0: i32, %arg1: i32) -> (i32, i32) {
    %c0_i32 = arith.constant 0 : i32
    %c0_i32_0 = arith.constant 0 : i32
    return %arg0, %c0_i32 : i32, i32
  }
}

</mosaic_0001>

<llo_original>
// kernel: gcn_second_forward.3
$region0: #{gcn_second_forward.3}
  #allocation0 [shape = 'u32[]', space=smem, size = 0x4, offset = 0x4, fixed_abs, tag = 'smem constant byte address 0x4 - core index']
  #allocation1 [shape = 'u32[144,128]{1,0:T(1,128)}', space=vmem, size = 0x12000, scoped, tag = 'internal scratch']
  #allocation2 [shape = 'f32[128,128]{1,0:T(8,128)}', space=vmem, size = 0x10000, scoped, tag = 'scratch operand']
  %s0 = inlined_call_operand.vmem [shape: bf16[256,256], index: 0, kind: input, shape index: {}]
  %s1 = inlined_call_operand.vmem [shape: bf16[256,128], index: 1, kind: input, shape index: {}]
  %s2 = inlined_call_operand.vmem [shape: f32[1,128], index: 2, kind: input, shape index: {}]
  %s3 = inlined_call_operand.vmem [shape: bf16[128,128], index: 3, kind: input, shape index: {}]
  %s4 = inlined_call_operand.vmem [shape: f32[1,128], index: 4, kind: input, shape index: {}]
  %s5 = inlined_call_operand.vmem [shape: f32[256,128], index: 5, kind: output, shape index: {}]
  %s6 = sld [smem:[#allocation0]]
  $region102: #{gcn_second_forward.3} parent=0
    _
  %s8 = ssub.s32 1, %s6
  %s9 = scalar_select 0, %s8, %s6
  $region1: #{gcn_second_forward.3} parent=0
    #allocation3 [shape = 'u8[65536]{0}', space=vmem, size = 0x10000, scoped, tag = 'input window, operand 0']
    loop: start=0, step=1, limit=6
    $region2: #{gcn_second_forward.3} parent=1 // loop_pre_header
      _
    $region3: #{gcn_second_forward.3} parent=1 // loop_header
      %s11 = sphi 0, %s15
      %p12 = scmp.ge.s32.totalorder %s11, 6
      %s18 = sphi 0, %s30
      %s19 = sphi 0, %s26
      %s20 = sphi 0, %s18
      %s21 = sphi 0, %s19
      %s22 = sphi 0, %s20
      %s23 = sphi 0, %s21
      %s35 = sphi 0, %s37
      %s38 = sphi 0, %s35
      %s39 = sphi 0, %s38
      %s55 = sphi 0, %s39
      %s59 = sphi 0, %s59
      %s61 = sphi 0, %s59
      %s62 = sphi 0, %s61
      %s76 = sphi 0, %s62
      %s80 = sphi 0, %s80
      %s82 = sphi 0, %s80
      %s83 = sphi 0, %s82
      %s97 = sphi 0, %s83
      %s101 = sphi 0, %s101
      %s103 = sphi 0, %s101
      %s104 = sphi 0, %s103
      %s118 = sphi 0, %s104
      %s122 = sphi 0, %s122
      %s124 = sphi 0, %s122
      %s125 = sphi 0, %s124
      %s139 = sphi 0, %s125
      %s145 = sphi 0, %s147
      %s148 = sphi 0, %s145
      %s149 = sphi 0, %s148
      %s165 = sphi 0, %s149
    $region4: #{gcn_second_forward.3} parent=1 // loop_header_branch
      %14 = sbr.rel (%p12) target = $region8
    $region5: #{gcn_second_forward.3} parent=1 // loop_body
      %s16 = ssub.s32 %s11, 1
      %s17 = ssub.s32 %s11, 2
      %s24 = sadd.s32 1, %s19
      %p25 = scmp.ge.s32.totalorder %s24, 2
      %s26 = scalar_select %p25, 0, %s24
      %s27 = sadd.s32 1, %s18
      %s28 = scalar_select %p25, %s27, %s18
      %p29 = scmp.ge.s32.totalorder %s28, 2
      %s30 = scalar_select %p29, 0, %s28
      %s31 = ssub.s32 %s18, %s30
      %s32 = ssub.s32 %s19, %s26
      %s33 = sor.u32 %s31, %s32
      %p34 = scmp.eq.s32.totalorder %s33, 0
      %s36 = sadd.s32 %s35, 1
      %s37 = scalar_select %p34, %s35, %s36
      %p40 = pneg %p34
      %p41 = scmp.eq.s32.totalorder %s11, 3
      %p42 = por %p40, %p41
      %p43 = scmp.ne.s32.totalorder %s35, %s38
      %p44 = scmp.eq.s32.totalorder %s11, 0
      %p45 = por %p43, %p44
      %p46 = scmp.ne.s32.totalorder %s35, %s38
      %p47 = scmp.eq.s32.totalorder %s16, 3
      %p48 = por %p46, %p47
      %p49 = scmp.ne.s32.totalorder %s38, %s39
      %p50 = scmp.eq.s32.totalorder %s16, 0
      %p51 = por %p49, %p50
      %p52 = scmp.ne.s32.totalorder %s38, %s39
      %p53 = scmp.eq.s32.totalorder %s17, 3
      %p54 = por %p52, %p53
      %p56 = scmp.ne.s32.totalorder %s39, %s55
      %p57 = scmp.eq.s32.totalorder %s17, 0
      %p58 = por %p56, %p57
      %s60 = sadd.s32 %s59, 1
      %p63 = scmp.eq.s32.totalorder %s11, 3
      %p64 = scmp.ne.s32.totalorder %s59, %s61
      %p65 = scmp.eq.s32.totalorder %s11, 0
      %p66 = por %p64, %p65
      %p67 = scmp.ne.s32.totalorder %s59, %s61
      %p68 = scmp.eq.s32.totalorder %s16, 3
      %p69 = por %p67, %p68
      %p70 = scmp.ne.s32.totalorder %s61, %s62
      %p71 = scmp.eq.s32.totalorder %s16, 0
      %p72 = por %p70, %p71
      %p73 = scmp.ne.s32.totalorder %s61, %s62
      %p74 = scmp.eq.s32.totalorder %s17, 3
      %p75 = por %p73, %p74
      %p77 = scmp.ne.s32.totalorder %s62, %s76
      %p78 = scmp.eq.s32.totalorder %s17, 0
      %p79 = por %p77, %p78
      %s81 = sadd.s32 %s80, 1
      %p84 = scmp.eq.s32.totalorder %s11, 3
      %p85 = scmp.ne.s32.totalorder %s80, %s82
      %p86 = scmp.eq.s32.totalorder %s11, 0
      %p87 = por %p85, %p86
      %p88 = scmp.ne.s32.totalorder %s80, %s82
      %p89 = scmp.eq.s32.totalorder %s16, 3
      %p90 = por %p88, %p89
      %p91 = scmp.ne.s32.totalorder %s82, %s83
      %p92 = scmp.eq.s32.totalorder %s16, 0
      %p93 = por %p91, %p92
      %p94 = scmp.ne.s32.totalorder %s82, %s83
      %p95 = scmp.eq.s32.totalorder %s17, 3
      %p96 = por %p94, %p95
      %p98 = scmp.ne.s32.totalorder %s83, %s97
      %p99 = scmp.eq.s32.totalorder %s17, 0
      %p100 = por %p98, %p99
      %s102 = sadd.s32 %s101, 1
      %p105 = scmp.eq.s32.totalorder %s11, 3
      %p106 = scmp.ne.s32.totalorder %s101, %s103
      %p107 = scmp.eq.s32.totalorder %s11, 0
      %p108 = por %p106, %p107
      %p109 = scmp.ne.s32.totalorder %s101, %s103
      %p110 = scmp.eq.s32.totalorder %s16, 3
      %p111 = por %p109, %p110
      %p112 = scmp.ne.s32.totalorder %s103, %s104
      %p113 = scmp.eq.s32.totalorder %s16, 0
      %p114 = por %p112, %p113
      %p115 = scmp.ne.s32.totalorder %s103, %s104
      %p116 = scmp.eq.s32.totalorder %s17, 3
      %p117 = por %p115, %p116
      %p119 = scmp.ne.s32.totalorder %s104, %s118
      %p120 = scmp.eq.s32.totalorder %s17, 0
      %p121 = por %p119, %p120
      %s123 = sadd.s32 %s122, 1
      %p126 = scmp.eq.s32.totalorder %s11, 3
      %p127 = scmp.ne.s32.totalorder %s122, %s124
      %p128 = scmp.eq.s32.totalorder %s11, 0
      %p129 = por %p127, %p128
      %p130 = scmp.ne.s32.totalorder %s122, %s124
      %p131 = scmp.eq.s32.totalorder %s16, 3
      %p132 = por %p130, %p131
      %p133 = scmp.ne.s32.totalorder %s124, %s125
      %p134 = scmp.eq.s32.totalorder %s16, 0
      %p135 = por %p133, %p134
      %p136 = scmp.ne.s32.totalorder %s124, %s125
      %p137 = scmp.eq.s32.totalorder %s17, 3
      %p138 = por %p136, %p137
      %p140 = scmp.ne.s32.totalorder %s125, %s139
      %p141 = scmp.eq.s32.totalorder %s17, 0
      %p142 = por %p140, %p141
      %s143 = ssub.s32 %s18, %s30
      %p144 = scmp.eq.s32.totalorder %s143, 0
      %s146 = sadd.s32 %s145, 1
      %s147 = scalar_select %p144, %s145, %s146
      %p150 = pneg %p144
      %p151 = scmp.eq.s32.totalorder %s11, 3
      %p152 = por %p150, %p151
      %p153 = scmp.ne.s32.totalorder %s145, %s148
      %p154 = scmp.eq.s32.totalorder %s11, 0
      %p155 = por %p153, %p154
      %p156 = scmp.ne.s32.totalorder %s145, %s148
      %p157 = scmp.eq.s32.totalorder %s16, 3
      %p158 = por %p156, %p157
      %p159 = scmp.ne.s32.totalorder %s148, %s149
      %p160 = scmp.eq.s32.totalorder %s16, 0
      %p161 = por %p159, %p160
      %p162 = scmp.ne.s32.totalorder %s148, %s149
      %p163 = scmp.eq.s32.totalorder %s17, 3
      %p164 = por %p162, %p163
      %p166 = scmp.ne.s32.totalorder %s149, %s165
      %p167 = scmp.eq.s32.totalorder %s17, 0
      %p168 = por %p166, %p167
      %p169 = scmp.le.s32.totalorder 1, %s11
      %p170 = scmp.lt.s32.totalorder %s11, 5
      %p171 = pnand %p169, %p170
      %p172 = pneg %p171
      // Predicated region
      $region9: #{gcn_second_forward.3} parent=5 // pred_check
        _
      $region10: #{gcn_second_forward.3} parent=5 // pred_check_branch
        %174 = sbr.rel (%p171) target = $region12
      $region11: #{gcn_second_forward.3} parent=5 // pred_region
        %s175 = ssub.s32 %s11, 1
        // Predicated region
        $region13: #{gcn_second_forward.3} parent=11 // pred_check
          %p176 = pneg %p72
        $region14: #{gcn_second_forward.3} parent=11 // pred_check_branch
          %178 = sbr.rel (%p176) target = $region16
        $region15: #{gcn_second_forward.3} parent=11 // pred_region
          _
        $region16: #{gcn_second_forward.3} parent=11 // pred_fallthru
          _
        // Predicated region
        $region17: #{gcn_second_forward.3} parent=11 // pred_check
          %p179 = pneg %p93
        $region18: #{gcn_second_forward.3} parent=11 // pred_check_branch
          %181 = sbr.rel (%p179) target = $region20
        $region19: #{gcn_second_forward.3} parent=11 // pred_region
          _
        $region20: #{gcn_second_forward.3} parent=11 // pred_fallthru
          _
        // Predicated region
        $region21: #{gcn_second_forward.3} parent=11 // pred_check
          %p182 = pneg %p114
        $region22: #{gcn_second_forward.3} parent=11 // pred_check_branch
          %184 = sbr.rel (%p182) target = $region24
        $region23: #{gcn_second_forward.3} parent=11 // pred_region
          _
        $region24: #{gcn_second_forward.3} parent=11 // pred_fallthru
          _
        // Predicated region
        $region25: #{gcn_second_forward.3} parent=11 // pred_check
          %p185 = pneg %p135
        $region26: #{gcn_second_forward.3} parent=11 // pred_check_branch
          %187 = sbr.rel (%p185) target = $region28
        $region27: #{gcn_second_forward.3} parent=11 // pred_region
          _
        $region28: #{gcn_second_forward.3} parent=11 // pred_fallthru
          _
      $region12: #{gcn_second_forward.3} parent=5 // pred_fallthru
        _
      %p188 = scmp.lt.s32.totalorder %s11, 4
      // Predicated region
      $region29: #{gcn_second_forward.3} parent=5 // pred_check
        %p189 = pneg %p188
      $region30: #{gcn_second_forward.3} parent=5 // pred_check_branch
        %191 = sbr.rel (%p189) target = $region32
      $region31: #{gcn_second_forward.3} parent=5 // pred_region
        // Predicated region
        $region33: #{gcn_second_forward.3} parent=31 // pred_check
          %p192 = pneg %p45
        $region34: #{gcn_second_forward.3} parent=31 // pred_check_branch
          %194 = sbr.rel (%p192) target = $region36
        $region35: #{gcn_second_forward.3} parent=31 // pred_region
          %s195 = sand.u32 %s35, 1
          %s196 = sand.u32 %s35, 1
          %s197 = smul.addr %s196, 64
          %s198 = scalar_lea.vmem [#allocation3], %s197
          %s199 = smul.u32 16, %s18
          %s200 = smul.addr %s199, 2
          %s201 = sadd.s32 %s19, %s200
          %s202 = smul.addr %s201, 4
          %s203 = scalar_lea.vmem %s0, %s202
          // Predicated region
          $region37: #{gcn_second_forward.3} parent=35 // pred_check
            _
          $region38: #{gcn_second_forward.3} parent=35 // pred_check_branch
            %205 = sbr.rel (0) target = $region40
          $region39: #{gcn_second_forward.3} parent=35 // pred_region
            // Predicated region
            $region41: #{gcn_second_forward.3} parent=39 // pred_check
              _
            $region42: #{gcn_second_forward.3} parent=39 // pred_check_branch
              %207 = sbr.rel target = $region44
            $region43: #{gcn_second_forward.3} parent=39 // pred_region
              // Predicated region
              $region56: #{gcn_second_forward.3} parent=43 // pred_check
                _
              $region57: #{gcn_second_forward.3} parent=43 // pred_check_branch
                %252 = sbr.rel (0) target = $region59
              $region58: #{gcn_second_forward.3} parent=43 // pred_region
                loop: start=0, step=1, limit=1
                $region60: #{gcn_second_forward.3} parent=58 // loop_pre_header
                  _
                $region61: #{gcn_second_forward.3} parent=58 // loop_header
                  %s254 = sphi 0, %s258
                  %p255 = scmp.ge.s32.totalorder %s254, 1
                  %s259 = sphi %s203, %s203
                  %s260 = sphi %s198, %s198
                $region62: #{gcn_second_forward.3} parent=58 // loop_header_branch
                  %257 = sbr.rel (%p255) target = $region66
                $region63: #{gcn_second_forward.3} parent=58 // loop_body
                  _
                $region64: #{gcn_second_forward.3} parent=58 // loop_footer
                  %s258 = sadd.s32 1, %s254
                $region65: #{gcn_second_forward.3} parent=58 // loop_footer_branch
                  %253 = sbr.rel target = $region61
                $region66: #{gcn_second_forward.3} parent=58 // loop_exit
                  _
                loop: start=0, step=1, limit=1
                $region67: #{gcn_second_forward.3} parent=58 // loop_pre_header
                  _
                $region68: #{gcn_second_forward.3} parent=58 // loop_header
                  %s263 = sphi 0, %s267
                  %p264 = scmp.ge.s32.totalorder %s263, 1
                  %s268 = sphi %s203, %s203
                  %s269 = sphi %s198, %s198
                $region69: #{gcn_second_forward.3} parent=58 // loop_header_branch
                  %266 = sbr.rel (%p264) target = $region73
                $region70: #{gcn_second_forward.3} parent=58 // loop_body
                  %v270 = vld [vmem:[%s268] sm:$0xf]
                  %271 = vst [vmem:[%s269] sm:$0xf] %v270
                  %v272 = vld [vmem:[%s268 + $0x8] sm:$0xf]
                  %273 = vst [vmem:[%s269 + $0x4] sm:$0xf] %v272
                  %v274 = vld [vmem:[%s268 + $0x10] sm:$0xf]
                  %275 = vst [vmem:[%s269 + $0x8] sm:$0xf] %v274
                  %v276 = vld [vmem:[%s268 + $0x18] sm:$0xf]
                  %277 = vst [vmem:[%s269 + $0xc] sm:$0xf] %v276
                  %v278 = vld [vmem:[%s268 + $0x20] sm:$0xf]
                  %279 = vst [vmem:[%s269 + $0x10] sm:$0xf] %v278
                  %v280 = vld [vmem:[%s268 + $0x28] sm:$0xf]
                  %281 = vst [vmem:[%s269 + $0x14] sm:$0xf] %v280
                  %v282 = vld [vmem:[%s268 + $0x30] sm:$0xf]
                  %283 = vst [vmem:[%s269 + $0x18] sm:$0xf] %v282
                  %v284 = vld [vmem:[%s268 + $0x38] sm:$0xf]
                  %285 = vst [vmem:[%s269 + $0x1c] sm:$0xf] %v284
                  %v286 = vld [vmem:[%s268 + $0x40] sm:$0xf]
                  %287 = vst [vmem:[%s269 + $0x20] sm:$0xf] %v286
                  %v288 = vld [vmem:[%s268 + $0x48] sm:$0xf]
                  %289 = vst [vmem:[%s269 + $0x24] sm:$0xf] %v288
                  %v290 = vld [vmem:[%s268 + $0x50] sm:$0xf]
                  %291 = vst [vmem:[%s269 + $0x28] sm:$0xf] %v290
                  %v292 = vld [vmem:[%s268 + $0x58] sm:$0xf]
                  %293 = vst [vmem:[%s269 + $0x2c] sm:$0xf] %v292
                  %v294 = vld [vmem:[%s268 + $0x60] sm:$0xf]
                  %295 = vst [vmem:[%s269 + $0x30] sm:$0xf] %v294
                  %v296 = vld [vmem:[%s268 + $0x68] sm:$0xf]
                  %297 = vst [vmem:[%s269 + $0x34] sm:$0xf] %v296
                  %v298 = vld [vmem:[%s268 + $0x70] sm:$0xf]
                  %299 = vst [vmem:[%s269 + $0x38] sm:$0xf] %v298
                  %v300 = vld [vmem:[%s268 + $0x78] sm:$0xf]
                  %301 = vst [vmem:[%s269 + $0x3c] sm:$0xf] %v300
                $region71: #{gcn_second_forward.3} parent=58 // loop_footer
                  %s267 = sadd.s32 1, %s263
                $region72: #{gcn_second_forward.3} parent=58 // loop_footer_branch
                  %262 = sbr.rel target = $region68
                $region73: #{gcn_second_forward.3} parent=58 // loop_exit
                  _
              $region59: #{gcn_second_forward.3} parent=43 // pred_fallthru
                _
            $region44: #{gcn_second_forward.3} parent=39 // pred_fallthru
              _
            // Predicated region
            $region45: #{gcn_second_forward.3} parent=39 // pred_check
              _
            $region46: #{gcn_second_forward.3} parent=39 // pred_check_branch
              %209 = sbr.rel (0) target = $region48
            $region47: #{gcn_second_forward.3} parent=39 // pred_region
              loop: start=0, step=1, limit=1
              $region49: #{gcn_second_forward.3} parent=47 // loop_pre_header
                _
              $region50: #{gcn_second_forward.3} parent=47 // loop_header
                %s212 = sphi 0, %s216
                %p213 = scmp.ge.s32.totalorder %s212, 1
                %s217 = sphi %s203, %s203
                %s218 = sphi %s198, %s198
              $region51: #{gcn_second_forward.3} parent=47 // loop_header_branch
                %215 = sbr.rel (%p213) target = $region55
              $region52: #{gcn_second_forward.3} parent=47 // loop_body
                %v219 = vld [vmem:[%s217] sm:$0xf]
                %220 = vst [vmem:[%s218] sm:$0xf] %v219
                %v221 = vld [vmem:[%s217 + $0x8] sm:$0xf]
                %222 = vst [vmem:[%s218 + $0x4] sm:$0xf] %v221
                %v223 = vld [vmem:[%s217 + $0x10] sm:$0xf]
                %224 = vst [vmem:[%s218 + $0x8] sm:$0xf] %v223
                %v225 = vld [vmem:[%s217 + $0x18] sm:$0xf]
                %226 = vst [vmem:[%s218 + $0xc] sm:$0xf] %v225
                %v227 = vld [vmem:[%s217 + $0x20] sm:$0xf]
                %228 = vst [vmem:[%s218 + $0x10] sm:$0xf] %v227
                %v229 = vld [vmem:[%s217 + $0x28] sm:$0xf]
                %230 = vst [vmem:[%s218 + $0x14] sm:$0xf] %v229
                %v231 = vld [vmem:[%s217 + $0x30] sm:$0xf]
                %232 = vst [vmem:[%s218 + $0x18] sm:$0xf] %v231
                %v233 = vld [vmem:[%s217 + $0x38] sm:$0xf]
                %234 = vst [vmem:[%s218 + $0x1c] sm:$0xf] %v233
                %v235 = vld [vmem:[%s217 + $0x40] sm:$0xf]
                %236 = vst [vmem:[%s218 + $0x20] sm:$0xf] %v235
                %v237 = vld [vmem:[%s217 + $0x48] sm:$0xf]
                %238 = vst [vmem:[%s218 + $0x24] sm:$0xf] %v237
                %v239 = vld [vmem:[%s217 + $0x50] sm:$0xf]
                %240 = vst [vmem:[%s218 + $0x28] sm:$0xf] %v239
                %v241 = vld [vmem:[%s217 + $0x58] sm:$0xf]
                %242 = vst [vmem:[%s218 + $0x2c] sm:$0xf] %v241
                %v243 = vld [vmem:[%s217 + $0x60] sm:$0xf]
                %244 = vst [vmem:[%s218 + $0x30] sm:$0xf] %v243
                %v245 = vld [vmem:[%s217 + $0x68] sm:$0xf]
                %246 = vst [vmem:[%s218 + $0x34] sm:$0xf] %v245
                %v247 = vld [vmem:[%s217 + $0x70] sm:$0xf]
                %248 = vst [vmem:[%s218 + $0x38] sm:$0xf] %v247
                %v249 = vld [vmem:[%s217 + $0x78] sm:$0xf]
                %250 = vst [vmem:[%s218 + $0x3c] sm:$0xf] %v249
              $region53: #{gcn_second_forward.3} parent=47 // loop_footer
                %s216 = sadd.s32 1, %s212
              $region54: #{gcn_second_forward.3} parent=47 // loop_footer_branch
                %211 = sbr.rel target = $region50
              $region55: #{gcn_second_forward.3} parent=47 // loop_exit
                _
            $region48: #{gcn_second_forward.3} parent=39 // pred_fallthru
              _
          $region40: #{gcn_second_forward.3} parent=35 // pred_fallthru
            _
          %302 = vnop
        $region36: #{gcn_second_forward.3} parent=31 // pred_fallthru
          _
      $region32: #{gcn_second_forward.3} parent=5 // pred_fallthru
        _
      %p303 = scmp.le.s32.totalorder 1, %s11
      %p304 = scmp.lt.s32.totalorder %s11, 5
      %p305 = pnand %p303, %p304
      %p306 = pneg %p305
      // Predicated region
      $region74: #{gcn_second_forward.3} parent=5 // pred_check
        _
      $region75: #{gcn_second_forward.3} parent=5 // pred_check_branch
        %308 = sbr.rel (%p305) target = $region77
      $region76: #{gcn_second_forward.3} parent=5 // pred_region
        %s309 = ssub.s32 %s11, 1
        %s310 = sand.u32 %s38, 1
        %s311 = sand.u32 %s38, 1
        %s312 = smul.addr %s311, 64
        %s313 = scalar_lea.vmem [#allocation3], %s312
        // Predicated region
        $region78: #{gcn_second_forward.3} parent=76 // pred_check
          %p314 = pneg %p51
        $region79: #{gcn_second_forward.3} parent=76 // pred_check_branch
          %316 = sbr.rel (%p314) target = $region81
        $region80: #{gcn_second_forward.3} parent=76 // pred_region
          _
        $region81: #{gcn_second_forward.3} parent=76 // pred_fallthru
          _
        %s317 = sand.u32 %s38, 1
        %s318 = sand.u32 %s38, 1
        %s319 = smul.addr %s318, 64
        %s320 = scalar_lea.vmem [#allocation3], %s319
        %p321 = pneg %p51
        %p322 = pneg %p48
        %p323 = pneg %p72
        %p324 = pneg %p69
        %p325 = pneg %p93
        %p326 = pneg %p90
        %p327 = pneg %p114
        %p328 = pneg %p111
        %p329 = pneg %p135
        %p330 = pneg %p132
        %p331 = pneg %p161
        %p332 = pneg %p158
        %s333 = smul.u32 16, %s20
        %p334 = scmp.lt.s32.totalorder %s333, 31
        %s335 = scalar_select %p334, %s333, 31
        %s336 = smul.addr %s335, 8
        %s337 = scalar_lea.vmem %s5, %s336
        %s338 = smul.u32 16, %s20
        %s339 = smul.u32 16, %s20
        %p340 = scmp.lt.s32.totalorder %s339, 31
        %s341 = scalar_select %p340, %s339, 31
        %s342 = smul.addr %s341, 8
        %s343 = scalar_lea.vmem %s5, %s342
        %s344 = smul.u32 16, %s20
        %p346 = scmp.eq.s32.totalorder %s21, 0
        // Predicated region
        $region82: #{gcn_second_forward.3} parent=76 // pred_check
          %p347 = pneg %p346
        $region83: #{gcn_second_forward.3} parent=76 // pred_check_branch
          %349 = sbr.rel (%p347) target = $region85
        $region84: #{gcn_second_forward.3} parent=76 // pred_region
          %350 = vst [vmem:[#allocation2] sm:$0xff] 0.0
          %351 = vst [vmem:[#allocation2 + $0x8] sm:$0xff] 0.0
          %352 = vst [vmem:[#allocation2 + $0x10] sm:$0xff] 0.0
          %353 = vst [vmem:[#allocation2 + $0x18] sm:$0xff] 0.0
          %354 = vst [vmem:[#allocation2 + $0x20] sm:$0xff] 0.0
          %355 = vst [vmem:[#allocation2 + $0x28] sm:$0xff] 0.0
          %356 = vst [vmem:[#allocation2 + $0x30] sm:$0xff] 0.0
          %357 = vst [vmem:[#allocation2 + $0x38] sm:$0xff] 0.0
          %358 = vst [vmem:[#allocation2 + $0x40] sm:$0xff] 0.0
          %359 = vst [vmem:[#allocation2 + $0x48] sm:$0xff] 0.0
          %360 = vst [vmem:[#allocation2 + $0x50] sm:$0xff] 0.0
          %361 = vst [vmem:[#allocation2 + $0x58] sm:$0xff] 0.0
          %362 = vst [vmem:[#allocation2 + $0x60] sm:$0xff] 0.0
          %363 = vst [vmem:[#allocation2 + $0x68] sm:$0xff] 0.0
          %364 = vst [vmem:[#allocation2 + $0x70] sm:$0xff] 0.0
          %365 = vst [vmem:[#allocation2 + $0x78] sm:$0xff] 0.0
        $region85: #{gcn_second_forward.3} parent=76 // pred_fallthru
          _
        %s366 = smul.u32 %s21, 128
        %s367 = sshra.s32 %s366, 3
        %s368 = sand.u32 %s366, 7
        %s369 = smul.addr %s367, 4
        %s370 = scalar_lea.vmem %s1, %s369
        %v371 = vld [vmem:[%s370] sm:$0xf]
        %v372 = vld [vmem:[%s370 + $0x4] sm:$0xf]
        %v373 = vld [vmem:[%s370 + $0x8] sm:$0xf]
        %v374 = vld [vmem:[%s370 + $0xc] sm:$0xf]
        %v375 = vld [vmem:[%s370 + $0x10] sm:$0xf]
        %v376 = vld [vmem:[%s370 + $0x14] sm:$0xf]
        %v377 = vld [vmem:[%s370 + $0x18] sm:$0xf]
        %v378 = vld [vmem:[%s370 + $0x1c] sm:$0xf]
        %v379 = vld [vmem:[%s370 + $0x20] sm:$0xf]
        %v380 = vld [vmem:[%s370 + $0x24] sm:$0xf]
        %v381 = vld [vmem:[%s370 + $0x28] sm:$0xf]
        %v382 = vld [vmem:[%s370 + $0x2c] sm:$0xf]
        %v383 = vld [vmem:[%s370 + $0x30] sm:$0xf]
        %v384 = vld [vmem:[%s370 + $0x34] sm:$0xf]
        %v385 = vld [vmem:[%s370 + $0x38] sm:$0xf]
        %v386 = vld [vmem:[%s370 + $0x3c] sm:$0xf]
        %v387 = vld [vmem:[#allocation2] sm:$0xff]
        %v388 = vld [vmem:[#allocation2 + $0x8] sm:$0xff]
        %v389 = vld [vmem:[#allocation2 + $0x10] sm:$0xff]
        %v390 = vld [vmem:[#allocation2 + $0x18] sm:$0xff]
        %v391 = vld [vmem:[#allocation2 + $0x20] sm:$0xff]
        %v392 = vld [vmem:[#allocation2 + $0x28] sm:$0xff]
        %v393 = vld [vmem:[#allocation2 + $0x30] sm:$0xff]
        %v394 = vld [vmem:[#allocation2 + $0x38] sm:$0xff]
        %v395 = vld [vmem:[#allocation2 + $0x40] sm:$0xff]
        %v396 = vld [vmem:[#allocation2 + $0x48] sm:$0xff]
        %v397 = vld [vmem:[#allocation2 + $0x50] sm:$0xff]
        %v398 = vld [vmem:[#allocation2 + $0x58] sm:$0xff]
        %v399 = vld [vmem:[#allocation2 + $0x60] sm:$0xff]
        %v400 = vld [vmem:[#allocation2 + $0x68] sm:$0xff]
        %v401 = vld [vmem:[#allocation2 + $0x70] sm:$0xff]
        %v402 = vld [vmem:[#allocation2 + $0x78] sm:$0xff]
        %v403 = vld [vmem:[%s313] sm:$0xf]
        %v404 = vld [vmem:[%s313 + $0x4] sm:$0xf]
        %v405 = vld [vmem:[%s313 + $0x8] sm:$0xf]
        %v406 = vld [vmem:[%s313 + $0xc] sm:$0xf]
        %v407 = vld [vmem:[%s313 + $0x10] sm:$0xf]
        %v408 = vld [vmem:[%s313 + $0x14] sm:$0xf]
        %v409 = vld [vmem:[%s313 + $0x18] sm:$0xf]
        %v410 = vld [vmem:[%s313 + $0x1c] sm:$0xf]
        %v411 = vld [vmem:[%s313 + $0x20] sm:$0xf]
        %v412 = vld [vmem:[%s313 + $0x24] sm:$0xf]
        %v413 = vld [vmem:[%s313 + $0x28] sm:$0xf]
        %v414 = vld [vmem:[%s313 + $0x2c] sm:$0xf]
        %v415 = vld [vmem:[%s313 + $0x30] sm:$0xf]
        %v416 = vld [vmem:[%s313 + $0x34] sm:$0xf]
        %v417 = vld [vmem:[%s313 + $0x38] sm:$0xf]
        %v418 = vld [vmem:[%s313 + $0x3c] sm:$0xf]
        %v435 = vunpack.c.l.b16 %v403
        %v436 = vunpack.c.l.b16 %v404
        %v437 = vunpack.c.l.b16 %v405
        %v438 = vunpack.c.l.b16 %v406
        %v439 = vunpack.c.l.b16 %v407
        %v440 = vunpack.c.l.b16 %v408
        %v441 = vunpack.c.l.b16 %v409
        %v442 = vunpack.c.l.b16 %v410
        %v443 = vunpack.c.l.b16 %v411
        %v444 = vunpack.c.l.b16 %v412
        %v445 = vunpack.c.l.b16 %v413
        %v446 = vunpack.c.l.b16 %v414
        %v447 = vunpack.c.l.b16 %v415
        %v448 = vunpack.c.l.b16 %v416
        %v449 = vunpack.c.l.b16 %v417
        %v450 = vunpack.c.l.b16 %v418
        %v451 = vpack.c.b16 %v436, %v435
        %v452 = vpack.c.b16 %v438, %v437
        %v453 = vpack.c.b16 %v440, %v439
        %v454 = vpack.c.b16 %v442, %v441
        %v455 = vpack.c.b16 %v444, %v443
        %v456 = vpack.c.b16 %v446, %v445
        %v457 = vpack.c.b16 %v448, %v447
        %v458 = vpack.c.b16 %v450, %v449
        %v483 = vunpack.c.l.b16 %v371
        %v484 = vunpack.c.l.b16 %v372
        %v485 = vunpack.c.l.b16 %v373
        %v486 = vunpack.c.l.b16 %v374
        %v487 = vunpack.c.l.b16 %v375
        %v488 = vunpack.c.l.b16 %v376
        %v489 = vunpack.c.l.b16 %v377
        %v490 = vunpack.c.l.b16 %v378
        %v491 = vunpack.c.l.b16 %v379
        %v492 = vunpack.c.l.b16 %v380
        %v493 = vunpack.c.l.b16 %v381
        %v494 = vunpack.c.l.b16 %v382
        %v495 = vunpack.c.l.b16 %v383
        %v496 = vunpack.c.l.b16 %v384
        %v497 = vunpack.c.l.b16 %v385
        %v498 = vunpack.c.l.b16 %v386
        %v499 = vpack.c.b16 %v484, %v483
        %v500 = vpack.c.b16 %v486, %v485
        %v501 = vpack.c.b16 %v488, %v487
        %v502 = vpack.c.b16 %v490, %v489
        %v503 = vpack.c.b16 %v492, %v491
        %v504 = vpack.c.b16 %v494, %v493
        %v505 = vpack.c.b16 %v496, %v495
        %v506 = vpack.c.b16 %v498, %v497
        %515 = vmatprep.subr.bf16.mxu0 0
        %516 = vmatpush1.bf16.msra.mxu0 %v499
        %517 = vmatprep.subr.bf16.mxu0 0
        %518 = vmatpush1.bf16.msra.mxu0 %v500
        %519 = vmatprep.subr.bf16.mxu0 0
        %520 = vmatpush1.bf16.msra.mxu0 %v501
        %521 = vmatprep.subr.bf16.mxu0 0
        %522 = vmatpush1.bf16.msra.mxu0 %v502
        %523 = vmatprep.subr.bf16.mxu0 0
        %524 = vmatpush1.bf16.msra.mxu0 %v503
        %525 = vmatprep.subr.bf16.mxu0 0
        %526 = vmatpush1.bf16.msra.mxu0 %v504
        %527 = vmatprep.subr.bf16.mxu0 0
        %528 = vmatpush1.bf16.msra.mxu0 %v505
        %529 = vmatprep.subr.bf16.mxu0 0
        %530 = vmatpush1.bf16.msra.mxu0 %v506
        %531 = vmatprep.subr.bf16.mxu0 0
        %532 = vmatpush1.bf16.msra.mxu0 0
        %533 = vmatprep.subr.bf16.mxu0 0
        %534 = vmatpush1.bf16.msra.mxu0 0
        %535 = vmatprep.subr.bf16.mxu0 0
        %536 = vmatpush1.bf16.msra.mxu0 0
        %537 = vmatprep.subr.bf16.mxu0 0
        %538 = vmatpush1.bf16.msra.mxu0 0
        %539 = vmatprep.subr.bf16.mxu0 0
        %540 = vmatpush1.bf16.msra.mxu0 0
        %541 = vmatprep.subr.bf16.mxu0 0
        %542 = vmatpush1.bf16.msra.mxu0 0
        %543 = vmatprep.subr.bf16.mxu0 0
        %544 = vmatpush1.bf16.msra.mxu0 0
        %545 = vmatprep.subr.bf16.mxu0 0
        %546 = vmatpush1.bf16.msra.mxu0 0
        %547 = vmatprep.mubr.bf16.mxu0 0
        %548 = vmatmul.mubr.bf16.gmra.mrb[0].mxu0 %v451
        %v549 = vpop.f32.mrb[0].mxu0
        %v550 = vadd.f32 0.0, %v549
        %v551 = vpop.f32.mrb[0].mxu0
        %v552 = vpop.f32.mrb[0].mxu0
        %v553 = vadd.f32 0.0, %v552
        %v554 = vpop.f32.mrb[0].mxu0
        %555 = vmatprep.mubr.bf16.mxu0 0
        %556 = vmatmul.mubr.bf16.gmra.mrb[0].mxu0 %v452
        %v557 = vpop.f32.mrb[0].mxu0
        %v558 = vadd.f32 0.0, %v557
        %v559 = vpop.f32.mrb[0].mxu0
        %v560 = vpop.f32.mrb[0].mxu0
        %v561 = vadd.f32 0.0, %v560
        %v562 = vpop.f32.mrb[0].mxu0
        %563 = vmatprep.mubr.bf16.mxu0 0
        %564 = vmatmul.mubr.bf16.gmra.mrb[0].mxu0 %v453
        %v565 = vpop.f32.mrb[0].mxu0
        %v566 = vadd.f32 0.0, %v565
        %v567 = vpop.f32.mrb[0].mxu0
        %v568 = vpop.f32.mrb[0].mxu0
        %v569 = vadd.f32 0.0, %v568
        %v570 = vpop.f32.mrb[0].mxu0
        %571 = vmatprep.mubr.bf16.mxu0 0
        %572 = vmatmul.mubr.bf16.gmra.mrb[0].mxu0 %v454
        %v573 = vpop.f32.mrb[0].mxu0
        %v574 = vadd.f32 0.0, %v573
        %v575 = vpop.f32.mrb[0].mxu0
        %v576 = vpop.f32.mrb[0].mxu0
        %v577 = vadd.f32 0.0, %v576
        %v578 = vpop.f32.mrb[0].mxu0
        %579 = vmatprep.mubr.bf16.mxu0 0
        %580 = vmatmul.mubr.bf16.gmra.mrb[0].mxu0 %v455
        %v581 = vpop.f32.mrb[0].mxu0
        %v582 = vadd.f32 0.0, %v581
        %v583 = vpop.f32.mrb[0].mxu0
        %v584 = vpop.f32.mrb[0].mxu0
        %v585 = vadd.f32 0.0, %v584
        %v586 = vpop.f32.mrb[0].mxu0
        %587 = vmatprep.mubr.bf16.mxu0 0
        %588 = vmatmul.mubr.bf16.gmra.mrb[0].mxu0 %v456
        %v589 = vpop.f32.mrb[0].mxu0
        %v590 = vadd.f32 0.0, %v589
        %v591 = vpop.f32.mrb[0].mxu0
        %v592 = vpop.f32.mrb[0].mxu0
        %v593 = vadd.f32 0.0, %v592
        %v594 = vpop.f32.mrb[0].mxu0
        %595 = vmatprep.mubr.bf16.mxu0 0
        %596 = vmatmul.mubr.bf16.gmra.mrb[0].mxu0 %v457
        %v597 = vpop.f32.mrb[0].mxu0
        %v598 = vadd.f32 0.0, %v597
        %v599 = vpop.f32.mrb[0].mxu0
        %v600 = vpop.f32.mrb[0].mxu0
        %v601 = vadd.f32 0.0, %v600
        %v602 = vpop.f32.mrb[0].mxu0
        %603 = vmatprep.mubr.bf16.mxu0 0
        %604 = vmatmul.mubr.bf16.gmra.mrb[0].mxu0 %v458
        %v605 = vpop.f32.mrb[0].mxu0
        %v606 = vadd.f32 0.0, %v605
        %v607 = vpop.f32.mrb[0].mxu0
        %v608 = vpop.f32.mrb[0].mxu0
        %v609 = vadd.f32 0.0, %v608
        %v610 = vpop.f32.mrb[0].mxu0
        %611 = vdwg.mxu0
        %v612 = vadd.f32 %v387, %v550
        %v613 = vadd.f32 %v388, %v553
        %v614 = vadd.f32 %v389, %v558
        %v615 = vadd.f32 %v390, %v561
        %v616 = vadd.f32 %v391, %v566
        %v617 = vadd.f32 %v392, %v569
        %v618 = vadd.f32 %v393, %v574
        %v619 = vadd.f32 %v394, %v577
        %v620 = vadd.f32 %v395, %v582
        %v621 = vadd.f32 %v396, %v585
        %v622 = vadd.f32 %v397, %v590
        %v623 = vadd.f32 %v398, %v593
        %v624 = vadd.f32 %v399, %v598
        %v625 = vadd.f32 %v400, %v601
        %v626 = vadd.f32 %v401, %v606
        %v627 = vadd.f32 %v402, %v609
        %628 = vst [vmem:[#allocation2] sm:$0xff] %v612
        %629 = vst [vmem:[#allocation2 + $0x8] sm:$0xff] %v613
        %630 = vst [vmem:[#allocation2 + $0x10] sm:$0xff] %v614
        %631 = vst [vmem:[#allocation2 + $0x18] sm:$0xff] %v615
        %632 = vst [vmem:[#allocation2 + $0x20] sm:$0xff] %v616
        %633 = vst [vmem:[#allocation2 + $0x28] sm:$0xff] %v617
        %634 = vst [vmem:[#allocation2 + $0x30] sm:$0xff] %v618
        %635 = vst [vmem:[#allocation2 + $0x38] sm:$0xff] %v619
        %636 = vst [vmem:[#allocation2 + $0x40] sm:$0xff] %v620
        %637 = vst [vmem:[#allocation2 + $0x48] sm:$0xff] %v621
        %638 = vst [vmem:[#allocation2 + $0x50] sm:$0xff] %v622
        %639 = vst [vmem:[#allocation2 + $0x58] sm:$0xff] %v623
        %640 = vst [vmem:[#allocation2 + $0x60] sm:$0xff] %v624
        %641 = vst [vmem:[#allocation2 + $0x68] sm:$0xff] %v625
        %642 = vst [vmem:[#allocation2 + $0x70] sm:$0xff] %v626
        %643 = vst [vmem:[#allocation2 + $0x78] sm:$0xff] %v627
        %p644 = scmp.eq.s32.totalorder %s21, 1
        // Predicated region
        $region86: #{gcn_second_forward.3} parent=76 // pred_check
          %p645 = pneg %p644
        $region87: #{gcn_second_forward.3} parent=76 // pred_check_branch
          %647 = sbr.rel (%p645) target = $region89
        $region88: #{gcn_second_forward.3} parent=76 // pred_region
          %v648 = vld [vmem:[#allocation2] sm:$0xff]
          %v649 = vld [vmem:[#allocation2 + $0x8] sm:$0xff]
          %v650 = vld [vmem:[#allocation2 + $0x10] sm:$0xff]
          %v651 = vld [vmem:[#allocation2 + $0x18] sm:$0xff]
          %v652 = vld [vmem:[#allocation2 + $0x20] sm:$0xff]
          %v653 = vld [vmem:[#allocation2 + $0x28] sm:$0xff]
          %v654 = vld [vmem:[#allocation2 + $0x30] sm:$0xff]
          %v655 = vld [vmem:[#allocation2 + $0x38] sm:$0xff]
          %v656 = vld [vmem:[#allocation2 + $0x40] sm:$0xff]
          %v657 = vld [vmem:[#allocation2 + $0x48] sm:$0xff]
          %v658 = vld [vmem:[#allocation2 + $0x50] sm:$0xff]
          %v659 = vld [vmem:[#allocation2 + $0x58] sm:$0xff]
          %v660 = vld [vmem:[#allocation2 + $0x60] sm:$0xff]
          %v661 = vld [vmem:[#allocation2 + $0x68] sm:$0xff]
          %v662 = vld [vmem:[#allocation2 + $0x70] sm:$0xff]
          %v663 = vld [vmem:[#allocation2 + $0x78] sm:$0xff]
          %v664 = vld [vmem:[%s2] sm:$0x1]
          %v666 = vlaneseq
          %v667 = vshrl.u32 %v666, 7
          %v668 = vsub.s32 0, %v667
          %v669 = vrot.slane %v664, %v668
          %v671 = vadd.f32 %v648, %v669
          %v672 = vadd.f32 %v649, %v669
          %v673 = vadd.f32 %v650, %v669
          %v674 = vadd.f32 %v651, %v669
          %v675 = vadd.f32 %v652, %v669
          %v676 = vadd.f32 %v653, %v669
          %v677 = vadd.f32 %v654, %v669
          %v678 = vadd.f32 %v655, %v669
          %v679 = vadd.f32 %v656, %v669
          %v680 = vadd.f32 %v657, %v669
          %v681 = vadd.f32 %v658, %v669
          %v682 = vadd.f32 %v659, %v669
          %v683 = vadd.f32 %v660, %v669
          %v684 = vadd.f32 %v661, %v669
          %v685 = vadd.f32 %v662, %v669
          %v686 = vadd.f32 %v663, %v669
          %v687 = vmax.f32 %v671, 0.0
          %v688 = vmax.f32 %v672, 0.0
          %v689 = vmax.f32 %v673, 0.0
          %v690 = vmax.f32 %v674, 0.0
          %v691 = vmax.f32 %v675, 0.0
          %v692 = vmax.f32 %v676, 0.0
          %v693 = vmax.f32 %v677, 0.0
          %v694 = vmax.f32 %v678, 0.0
          %v695 = vmax.f32 %v679, 0.0
          %v696 = vmax.f32 %v680, 0.0
          %v697 = vmax.f32 %v681, 0.0
          %v698 = vmax.f32 %v682, 0.0
          %v699 = vmax.f32 %v683, 0.0
          %v700 = vmax.f32 %v684, 0.0
          %v701 = vmax.f32 %v685, 0.0
          %v702 = vmax.f32 %v686, 0.0
          %v703 = vpack.c.bf16 %v688, %v687
          %v704 = vpack.c.bf16 %v690, %v689
          %v705 = vpack.c.bf16 %v692, %v691
          %v706 = vpack.c.bf16 %v694, %v693
          %v707 = vpack.c.bf16 %v696, %v695
          %v708 = vpack.c.bf16 %v698, %v697
          %v709 = vpack.c.bf16 %v700, %v699
          %v710 = vpack.c.bf16 %v702, %v701
          %v711 = vld [vmem:[%s3] sm:$0xf]
          %v712 = vld [vmem:[%s3 + $0x4] sm:$0xf]
          %v713 = vld [vmem:[%s3 + $0x8] sm:$0xf]
          %v714 = vld [vmem:[%s3 + $0xc] sm:$0xf]
          %v715 = vld [vmem:[%s3 + $0x10] sm:$0xf]
          %v716 = vld [vmem:[%s3 + $0x14] sm:$0xf]
          %v717 = vld [vmem:[%s3 + $0x18] sm:$0xf]
          %v718 = vld [vmem:[%s3 + $0x1c] sm:$0xf]
          %v719 = vld [vmem:[%s3 + $0x20] sm:$0xf]
          %v720 = vld [vmem:[%s3 + $0x24] sm:$0xf]
          %v721 = vld [vmem:[%s3 + $0x28] sm:$0xf]
          %v722 = vld [vmem:[%s3 + $0x2c] sm:$0xf]
          %v723 = vld [vmem:[%s3 + $0x30] sm:$0xf]
          %v724 = vld [vmem:[%s3 + $0x34] sm:$0xf]
          %v725 = vld [vmem:[%s3 + $0x38] sm:$0xf]
          %v726 = vld [vmem:[%s3 + $0x3c] sm:$0xf]
          %v727 = vld [vmem:[%s4] sm:$0x1]
          %v729 = vlaneseq
          %v730 = vshrl.u32 %v729, 7
          %v731 = vsub.s32 0, %v730
          %v732 = vrot.slane %v727, %v731
          %v750 = vunpack.c.l.b16 %v711
          %v751 = vunpack.c.l.b16 %v712
          %v752 = vunpack.c.l.b16 %v713
          %v753 = vunpack.c.l.b16 %v714
          %v754 = vunpack.c.l.b16 %v715
          %v755 = vunpack.c.l.b16 %v716
          %v756 = vunpack.c.l.b16 %v717
          %v757 = vunpack.c.l.b16 %v718
          %v758 = vunpack.c.l.b16 %v719
          %v759 = vunpack.c.l.b16 %v720
          %v760 = vunpack.c.l.b16 %v721
          %v761 = vunpack.c.l.b16 %v722
          %v762 = vunpack.c.l.b16 %v723
          %v763 = vunpack.c.l.b16 %v724
          %v764 = vunpack.c.l.b16 %v725
          %v765 = vunpack.c.l.b16 %v726
          %v766 = vpack.c.b16 %v751, %v750
          %v767 = vpack.c.b16 %v753, %v752
          %v768 = vpack.c.b16 %v755, %v754
          %v769 = vpack.c.b16 %v757, %v756
          %v770 = vpack.c.b16 %v759, %v758
          %v771 = vpack.c.b16 %v761, %v760
          %v772 = vpack.c.b16 %v763, %v762
          %v773 = vpack.c.b16 %v765, %v764
          %782 = vmatprep.subr.bf16.mxu0 0
          %783 = vmatpush1.bf16.msra.mxu0 %v766
          %784 = vmatprep.subr.bf16.mxu0 0
          %785 = vmatpush1.bf16.msra.mxu0 %v767
          %786 = vmatprep.subr.bf16.mxu0 0
          %787 = vmatpush1.bf16.msra.mxu0 %v768
          %788 = vmatprep.subr.bf16.mxu0 0
          %789 = vmatpush1.bf16.msra.mxu0 %v769
          %790 = vmatprep.subr.bf16.mxu0 0
          %791 = vmatpush1.bf16.msra.mxu0 %v770
          %792 = vmatprep.subr.bf16.mxu0 0
          %793 = vmatpush1.bf16.msra.mxu0 %v771
          %794 = vmatprep.subr.bf16.mxu0 0
          %795 = vmatpush1.bf16.msra.mxu0 %v772
          %796 = vmatprep.subr.bf16.mxu0 0
          %797 = vmatpush1.bf16.msra.mxu0 %v773
          %798 = vmatprep.subr.bf16.mxu0 0
          %799 = vmatpush1.bf16.msra.mxu0 0
          %800 = vmatprep.subr.bf16.mxu0 0
          %801 = vmatpush1.bf16.msra.mxu0 0
          %802 = vmatprep.subr.bf16.mxu0 0
          %803 = vmatpush1.bf16.msra.mxu0 0
          %804 = vmatprep.subr.bf16.mxu0 0
          %805 = vmatpush1.bf16.msra.mxu0 0
          %806 = vmatprep.subr.bf16.mxu0 0
          %807 = vmatpush1.bf16.msra.mxu0 0
          %808 = vmatprep.subr.bf16.mxu0 0
          %809 = vmatpush1.bf16.msra.mxu0 0
          %810 = vmatprep.subr.bf16.mxu0 0
          %811 = vmatpush1.bf16.msra.mxu0 0
          %812 = vmatprep.subr.bf16.mxu0 0
          %813 = vmatpush1.bf16.msra.mxu0 0
          %814 = vmatprep.mubr.bf16.mxu0 0
          %815 = vmatmul.mubr.bf16.gmra.mrb[0].mxu0 %v703
          %v816 = vpop.f32.mrb[0].mxu0
          %v817 = vadd.f32 %v732, %v816
          %v818 = vpop.f32.mrb[0].mxu0
          %v819 = vpop.f32.mrb[0].mxu0
          %v820 = vadd.f32 %v732, %v819
          %v821 = vpop.f32.mrb[0].mxu0
          %822 = vmatprep.mubr.bf16.mxu0 0
          %823 = vmatmul.mubr.bf16.gmra.mrb[0].mxu0 %v704
          %v824 = vpop.f32.mrb[0].mxu0
          %v825 = vadd.f32 %v732, %v824
          %v826 = vpop.f32.mrb[0].mxu0
          %v827 = vpop.f32.mrb[0].mxu0
          %v828 = vadd.f32 %v732, %v827
          %v829 = vpop.f32.mrb[0].mxu0
          %830 = vmatprep.mubr.bf16.mxu0 0
          %831 = vmatmul.mubr.bf16.gmra.mrb[0].mxu0 %v705
          %v832 = vpop.f32.mrb[0].mxu0
          %v833 = vadd.f32 %v732, %v832
          %v834 = vpop.f32.mrb[0].mxu0
          %v835 = vpop.f32.mrb[0].mxu0
          %v836 = vadd.f32 %v732, %v835
          %v837 = vpop.f32.mrb[0].mxu0
          %838 = vmatprep.mubr.bf16.mxu0 0
          %839 = vmatmul.mubr.bf16.gmra.mrb[0].mxu0 %v706
          %v840 = vpop.f32.mrb[0].mxu0
          %v841 = vadd.f32 %v732, %v840
          %v842 = vpop.f32.mrb[0].mxu0
          %v843 = vpop.f32.mrb[0].mxu0
          %v844 = vadd.f32 %v732, %v843
          %v845 = vpop.f32.mrb[0].mxu0
          %846 = vmatprep.mubr.bf16.mxu0 0
          %847 = vmatmul.mubr.bf16.gmra.mrb[0].mxu0 %v707
          %v848 = vpop.f32.mrb[0].mxu0
          %v849 = vadd.f32 %v732, %v848
          %v850 = vpop.f32.mrb[0].mxu0
          %v851 = vpop.f32.mrb[0].mxu0
          %v852 = vadd.f32 %v732, %v851
          %v853 = vpop.f32.mrb[0].mxu0
          %854 = vmatprep.mubr.bf16.mxu0 0
          %855 = vmatmul.mubr.bf16.gmra.mrb[0].mxu0 %v708
          %v856 = vpop.f32.mrb[0].mxu0
          %v857 = vadd.f32 %v732, %v856
          %v858 = vpop.f32.mrb[0].mxu0
          %v859 = vpop.f32.mrb[0].mxu0
          %v860 = vadd.f32 %v732, %v859
          %v861 = vpop.f32.mrb[0].mxu0
          %862 = vmatprep.mubr.bf16.mxu0 0
          %863 = vmatmul.mubr.bf16.gmra.mrb[0].mxu0 %v709
          %v864 = vpop.f32.mrb[0].mxu0
          %v865 = vadd.f32 %v732, %v864
          %v866 = vpop.f32.mrb[0].mxu0
          %v867 = vpop.f32.mrb[0].mxu0
          %v868 = vadd.f32 %v732, %v867
          %v869 = vpop.f32.mrb[0].mxu0
          %870 = vmatprep.mubr.bf16.mxu0 0
          %871 = vmatmul.mubr.bf16.gmra.mrb[0].mxu0 %v710
          %v872 = vpop.f32.mrb[0].mxu0
          %v873 = vadd.f32 %v732, %v872
          %v874 = vpop.f32.mrb[0].mxu0
          %v875 = vpop.f32.mrb[0].mxu0
          %v876 = vadd.f32 %v732, %v875
          %v877 = vpop.f32.mrb[0].mxu0
          %878 = vdwg.mxu0
          %879 = vst [vmem:[%s343] sm:$0xff] %v817
          %880 = vst [vmem:[%s343 + $0x8] sm:$0xff] %v820
          %881 = vst [vmem:[%s343 + $0x10] sm:$0xff] %v825
          %882 = vst [vmem:[%s343 + $0x18] sm:$0xff] %v828
          %883 = vst [vmem:[%s343 + $0x20] sm:$0xff] %v833
          %884 = vst [vmem:[%s343 + $0x28] sm:$0xff] %v836
          %885 = vst [vmem:[%s343 + $0x30] sm:$0xff] %v841
          %886 = vst [vmem:[%s343 + $0x38] sm:$0xff] %v844
          %887 = vst [vmem:[%s343 + $0x40] sm:$0xff] %v849
          %888 = vst [vmem:[%s343 + $0x48] sm:$0xff] %v852
          %889 = vst [vmem:[%s343 + $0x50] sm:$0xff] %v857
          %890 = vst [vmem:[%s343 + $0x58] sm:$0xff] %v860
          %891 = vst [vmem:[%s343 + $0x60] sm:$0xff] %v865
          %892 = vst [vmem:[%s343 + $0x68] sm:$0xff] %v868
          %893 = vst [vmem:[%s343 + $0x70] sm:$0xff] %v873
          %894 = vst [vmem:[%s343 + $0x78] sm:$0xff] %v876
        $region89: #{gcn_second_forward.3} parent=76 // pred_fallthru
          _
        %s895 = smul.u32 16, %s20
        %p896 = scmp.lt.s32.totalorder %s895, 31
        %s897 = scalar_select %p896, %s895, 31
        %s898 = smul.addr %s897, 8
        %s899 = scalar_lea.vmem %s5, %s898
        // Predicated region
        $region90: #{gcn_second_forward.3} parent=76 // pred_check
          %p900 = pneg %p158
        $region91: #{gcn_second_forward.3} parent=76 // pred_check_branch
          %902 = sbr.rel (%p900) target = $region93
        $region92: #{gcn_second_forward.3} parent=76 // pred_region
          %s903 = smul.u32 16, %s20
        $region93: #{gcn_second_forward.3} parent=76 // pred_fallthru
          _
      $region77: #{gcn_second_forward.3} parent=5 // pred_fallthru
        _
      %p904 = scmp.le.s32.totalorder 2, %s11
      // Predicated region
      $region94: #{gcn_second_forward.3} parent=5 // pred_check
        %p905 = pneg %p904
      $region95: #{gcn_second_forward.3} parent=5 // pred_check_branch
        %907 = sbr.rel (%p905) target = $region97
      $region96: #{gcn_second_forward.3} parent=5 // pred_region
        %s908 = ssub.s32 %s11, 2
        // Predicated region
        $region98: #{gcn_second_forward.3} parent=96 // pred_check
          %p909 = pneg %p164
        $region99: #{gcn_second_forward.3} parent=96 // pred_check_branch
          %911 = sbr.rel (%p909) target = $region101
        $region100: #{gcn_second_forward.3} parent=96 // pred_region
          %s912 = smul.u32 16, %s22
          %p913 = scmp.lt.s32.totalorder %s912, 31
          %s914 = scalar_select %p913, %s912, 31
          %s915 = smul.addr %s914, 8
          %s916 = scalar_lea.vmem %s5, %s915
        $region101: #{gcn_second_forward.3} parent=96 // pred_fallthru
          _
      $region97: #{gcn_second_forward.3} parent=5 // pred_fallthru
        _
    $region6: #{gcn_second_forward.3} parent=1 // loop_footer
      %s15 = sadd.s32 1, %s11
    $region7: #{gcn_second_forward.3} parent=1 // loop_footer_branch
      %10 = sbr.rel target = $region3
    $region8: #{gcn_second_forward.3} parent=1 // loop_exit
      _

// kernel: gcn_second_forward.2
$region0: #{gcn_second_forward.2}
  #allocation0 [shape = 'u32[]', space=smem, size = 0x4, offset = 0x4, fixed_abs, tag = 'smem constant byte address 0x4 - core index']
  #allocation1 [shape = 'u32[144,128]{1,0:T(1,128)}', space=vmem, size = 0x12000, scoped, tag = 'internal scratch']
  %s0 = inlined_call_operand.vmem [shape: bf16[256,128], index: 0, kind: input, shape index: {}]
  %s1 = inlined_call_operand.vmem [shape: bf16[128,128], index: 1, kind: input, shape index: {}]
  %s2 = inlined_call_operand.vmem [shape: bf16[256,128], index: 2, kind: output, shape index: {}]
  %s3 = sld [smem:[#allocation0]]
  $region41: #{gcn_second_forward.2} parent=0
    _
  %s5 = ssub.s32 1, %s3
  %s6 = scalar_select 0, %s5, %s3
  loop: start=0, step=1, limit=4
  $region2: #{gcn_second_forward.2} parent=0 // loop_pre_header
    _
  $region3: #{gcn_second_forward.2} parent=0 // loop_header
    %s8 = sphi 0, %s12
    %p9 = scmp.ge.s32.totalorder %s8, 4
    %s18 = sphi 0, %s20
    %s21 = sphi 0, %s18
    %s22 = sphi 0, %s21
    %s38 = sphi 0, %s22
    %s42 = sphi 0, %s42
    %s44 = sphi 0, %s42
    %s45 = sphi 0, %s44
    %s59 = sphi 0, %s45
    %s65 = sphi 0, %s67
    %s68 = sphi 0, %s65
    %s69 = sphi 0, %s68
    %s85 = sphi 0, %s69
  $region4: #{gcn_second_forward.2} parent=0 // loop_header_branch
    %11 = sbr.rel (%p9) target = $region8
  $region5: #{gcn_second_forward.2} parent=0 // loop_body
    %s13 = ssub.s32 %s8, 1
    %s14 = ssub.s32 %s8, 2
    %s15 = sadd.s32 %s8, 1
    %s16 = ssub.s32 %s8, %s15
    %p17 = scmp.eq.s32.totalorder %s16, 0
    %s19 = sadd.s32 %s18, 1
    %s20 = scalar_select %p17, %s18, %s19
    %p23 = pneg %p17
    %p24 = scmp.eq.s32.totalorder %s8, 1
    %p25 = por %p23, %p24
    %p26 = scmp.ne.s32.totalorder %s18, %s21
    %p27 = scmp.eq.s32.totalorder %s8, 0
    %p28 = por %p26, %p27
    %p29 = scmp.ne.s32.totalorder %s18, %s21
    %p30 = scmp.eq.s32.totalorder %s13, 1
    %p31 = por %p29, %p30
    %p32 = scmp.ne.s32.totalorder %s21, %s22
    %p33 = scmp.eq.s32.totalorder %s13, 0
    %p34 = por %p32, %p33
    %p35 = scmp.ne.s32.totalorder %s21, %s22
    %p36 = scmp.eq.s32.totalorder %s14, 1
    %p37 = por %p35, %p36
    %p39 = scmp.ne.s32.totalorder %s22, %s38
    %p40 = scmp.eq.s32.totalorder %s14, 0
    %p41 = por %p39, %p40
    %s43 = sadd.s32 %s42, 1
    %p46 = scmp.eq.s32.totalorder %s8, 1
    %p47 = scmp.ne.s32.totalorder %s42, %s44
    %p48 = scmp.eq.s32.totalorder %s8, 0
    %p49 = por %p47, %p48
    %p50 = scmp.ne.s32.totalorder %s42, %s44
    %p51 = scmp.eq.s32.totalorder %s13, 1
    %p52 = por %p50, %p51
    %p53 = scmp.ne.s32.totalorder %s44, %s45
    %p54 = scmp.eq.s32.totalorder %s13, 0
    %p55 = por %p53, %p54
    %p56 = scmp.ne.s32.totalorder %s44, %s45
    %p57 = scmp.eq.s32.totalorder %s14, 1
    %p58 = por %p56, %p57
    %p60 = scmp.ne.s32.totalorder %s45, %s59
    %p61 = scmp.eq.s32.totalorder %s14, 0
    %p62 = por %p60, %p61
    %s63 = ssub.s32 %s8, %s15
    %p64 = scmp.eq.s32.totalorder %s63, 0
    %s66 = sadd.s32 %s65, 1
    %s67 = scalar_select %p64, %s65, %s66
    %p70 = pneg %p64
    %p71 = scmp.eq.s32.totalorder %s8, 1
    %p72 = por %p70, %p71
    %p73 = scmp.ne.s32.totalorder %s65, %s68
    %p74 = scmp.eq.s32.totalorder %s8, 0
    %p75 = por %p73, %p74
    %p76 = scmp.ne.s32.totalorder %s65, %s68
    %p77 = scmp.eq.s32.totalorder %s13, 1
    %p78 = por %p76, %p77
    %p79 = scmp.ne.s32.totalorder %s68, %s69
    %p80 = scmp.eq.s32.totalorder %s13, 0
    %p81 = por %p79, %p80
    %p82 = scmp.ne.s32.totalorder %s68, %s69
    %p83 = scmp.eq.s32.totalorder %s14, 1
    %p84 = por %p82, %p83
    %p86 = scmp.ne.s32.totalorder %s69, %s85
    %p87 = scmp.eq.s32.totalorder %s14, 0
    %p88 = por %p86, %p87
    %p89 = scmp.le.s32.totalorder 1, %s8
    %p90 = scmp.lt.s32.totalorder %s8, 3
    %p91 = pnand %p89, %p90
    %p92 = pneg %p91
    // Predicated region
    $region9: #{gcn_second_forward.2} parent=5 // pred_check
      _
    $region10: #{gcn_second_forward.2} parent=5 // pred_check_branch
      %94 = sbr.rel (%p91) target = $region12
    $region11: #{gcn_second_forward.2} parent=5 // pred_region
      %s95 = ssub.s32 %s8, 1
      // Predicated region
      $region13: #{gcn_second_forward.2} parent=11 // pred_check
        %p96 = pneg %p55
      $region14: #{gcn_second_forward.2} parent=11 // pred_check_branch
        %98 = sbr.rel (%p96) target = $region16
      $region15: #{gcn_second_forward.2} parent=11 // pred_region
        _
      $region16: #{gcn_second_forward.2} parent=11 // pred_fallthru
        _
    $region12: #{gcn_second_forward.2} parent=5 // pred_fallthru
      _
    %p99 = scmp.lt.s32.totalorder %s8, 2
    // Predicated region
    $region17: #{gcn_second_forward.2} parent=5 // pred_check
      %p100 = pneg %p99
    $region18: #{gcn_second_forward.2} parent=5 // pred_check_branch
      %102 = sbr.rel (%p100) target = $region20
    $region19: #{gcn_second_forward.2} parent=5 // pred_region
      // Predicated region
      $region21: #{gcn_second_forward.2} parent=19 // pred_check
        %p103 = pneg %p28
      $region22: #{gcn_second_forward.2} parent=19 // pred_check_branch
        %105 = sbr.rel (%p103) target = $region24
      $region23: #{gcn_second_forward.2} parent=19 // pred_region
        %s106 = smul.u32 16, %s8
        %p107 = scmp.lt.s32.totalorder %s106, 31
        %s108 = scalar_select %p107, %s106, 31
        %s109 = smul.addr %s108, 4
        %s110 = scalar_lea.vmem %s0, %s109
        %s111 = smul.u32 16, %s8
      $region24: #{gcn_second_forward.2} parent=19 // pred_fallthru
        _
    $region20: #{gcn_second_forward.2} parent=5 // pred_fallthru
      _
    %p112 = scmp.le.s32.totalorder 1, %s8
    %p113 = scmp.lt.s32.totalorder %s8, 3
    %p114 = pnand %p112, %p113
    %p115 = pneg %p114
    // Predicated region
    $region25: #{gcn_second_forward.2} parent=5 // pred_check
      _
    $region26: #{gcn_second_forward.2} parent=5 // pred_check_branch
      %117 = sbr.rel (%p114) target = $region28
    $region27: #{gcn_second_forward.2} parent=5 // pred_region
      %s118 = ssub.s32 %s8, 1
      %s119 = smul.u32 16, %s13
      %p120 = scmp.lt.s32.totalorder %s119, 31
      %s121 = scalar_select %p120, %s119, 31
      %s122 = smul.addr %s121, 4
      %s123 = scalar_lea.vmem %s0, %s122
      %p124 = pneg %p34
      %p125 = pneg %p31
      %p126 = pneg %p55
      %p127 = pneg %p52
      %p128 = pneg %p81
      %p129 = pneg %p78
      %s130 = smul.u32 16, %s13
      %p131 = scmp.lt.s32.totalorder %s130, 31
      %s132 = scalar_select %p131, %s130, 31
      %s133 = smul.addr %s132, 4
      %s134 = scalar_lea.vmem %s2, %s133
      %s135 = smul.u32 16, %s13
      %p136 = scmp.lt.s32.totalorder %s135, 31
      %s137 = scalar_select %p136, %s135, 31
      %s138 = smul.addr %s137, 4
      %s139 = scalar_lea.vmem %s0, %s138
      %s140 = smul.u32 16, %s13
      %s141 = smul.u32 16, %s13
      %p142 = scmp.lt.s32.totalorder %s141, 31
      %s143 = scalar_select %p142, %s141, 31
      %s144 = smul.addr %s143, 4
      %s145 = scalar_lea.vmem %s2, %s144
      %s146 = smul.u32 16, %s13
      %v148 = vld [vmem:[%s139] sm:$0xf]
      %v149 = vld [vmem:[%s139 + $0x4] sm:$0xf]
      %v150 = vld [vmem:[%s139 + $0x8] sm:$0xf]
      %v151 = vld [vmem:[%s139 + $0xc] sm:$0xf]
      %v152 = vld [vmem:[%s139 + $0x10] sm:$0xf]
      %v153 = vld [vmem:[%s139 + $0x14] sm:$0xf]
      %v154 = vld [vmem:[%s139 + $0x18] sm:$0xf]
      %v155 = vld [vmem:[%s139 + $0x1c] sm:$0xf]
      %v156 = vld [vmem:[%s139 + $0x20] sm:$0xf]
      %v157 = vld [vmem:[%s139 + $0x24] sm:$0xf]
      %v158 = vld [vmem:[%s139 + $0x28] sm:$0xf]
      %v159 = vld [vmem:[%s139 + $0x2c] sm:$0xf]
      %v160 = vld [vmem:[%s139 + $0x30] sm:$0xf]
      %v161 = vld [vmem:[%s139 + $0x34] sm:$0xf]
      %v162 = vld [vmem:[%s139 + $0x38] sm:$0xf]
      %v163 = vld [vmem:[%s139 + $0x3c] sm:$0xf]
      %v164 = vld [vmem:[%s1] sm:$0xf]
      %v165 = vld [vmem:[%s1 + $0x4] sm:$0xf]
      %v166 = vld [vmem:[%s1 + $0x8] sm:$0xf]
      %v167 = vld [vmem:[%s1 + $0xc] sm:$0xf]
      %v168 = vld [vmem:[%s1 + $0x10] sm:$0xf]
      %v169 = vld [vmem:[%s1 + $0x14] sm:$0xf]
      %v170 = vld [vmem:[%s1 + $0x18] sm:$0xf]
      %v171 = vld [vmem:[%s1 + $0x1c] sm:$0xf]
      %v172 = vld [vmem:[%s1 + $0x20] sm:$0xf]
      %v173 = vld [vmem:[%s1 + $0x24] sm:$0xf]
      %v174 = vld [vmem:[%s1 + $0x28] sm:$0xf]
      %v175 = vld [vmem:[%s1 + $0x2c] sm:$0xf]
      %v176 = vld [vmem:[%s1 + $0x30] sm:$0xf]
      %v177 = vld [vmem:[%s1 + $0x34] sm:$0xf]
      %v178 = vld [vmem:[%s1 + $0x38] sm:$0xf]
      %v179 = vld [vmem:[%s1 + $0x3c] sm:$0xf]
      %v196 = vunpack.c.l.b16 %v148
      %v197 = vunpack.c.l.b16 %v149
      %v198 = vunpack.c.l.b16 %v150
      %v199 = vunpack.c.l.b16 %v151
      %v200 = vunpack.c.l.b16 %v152
      %v201 = vunpack.c.l.b16 %v153
      %v202 = vunpack.c.l.b16 %v154
      %v203 = vunpack.c.l.b16 %v155
      %v204 = vunpack.c.l.b16 %v156
      %v205 = vunpack.c.l.b16 %v157
      %v206 = vunpack.c.l.b16 %v158
      %v207 = vunpack.c.l.b16 %v159
      %v208 = vunpack.c.l.b16 %v160
      %v209 = vunpack.c.l.b16 %v161
      %v210 = vunpack.c.l.b16 %v162
      %v211 = vunpack.c.l.b16 %v163
      %v212 = vpack.c.b16 %v197, %v196
      %v213 = vpack.c.b16 %v199, %v198
      %v214 = vpack.c.b16 %v201, %v200
      %v215 = vpack.c.b16 %v203, %v202
      %v216 = vpack.c.b16 %v205, %v204
      %v217 = vpack.c.b16 %v207, %v206
      %v218 = vpack.c.b16 %v209, %v208
      %v219 = vpack.c.b16 %v211, %v210
      %v244 = vunpack.c.l.b16 %v164
      %v245 = vunpack.c.l.b16 %v165
      %v246 = vunpack.c.l.b16 %v166
      %v247 = vunpack.c.l.b16 %v167
      %v248 = vunpack.c.l.b16 %v168
      %v249 = vunpack.c.l.b16 %v169
      %v250 = vunpack.c.l.b16 %v170
      %v251 = vunpack.c.l.b16 %v171
      %v252 = vunpack.c.l.b16 %v172
      %v253 = vunpack.c.l.b16 %v173
      %v254 = vunpack.c.l.b16 %v174
      %v255 = vunpack.c.l.b16 %v175
      %v256 = vunpack.c.l.b16 %v176
      %v257 = vunpack.c.l.b16 %v177
      %v258 = vunpack.c.l.b16 %v178
      %v259 = vunpack.c.l.b16 %v179
      %v260 = vpack.c.b16 %v245, %v244
      %v261 = vpack.c.b16 %v247, %v246
      %v262 = vpack.c.b16 %v249, %v248
      %v263 = vpack.c.b16 %v251, %v250
      %v264 = vpack.c.b16 %v253, %v252
      %v265 = vpack.c.b16 %v255, %v254
      %v266 = vpack.c.b16 %v257, %v256
      %v267 = vpack.c.b16 %v259, %v258
      %276 = vmatprep.subr.bf16.mxu0 0
      %277 = vmatpush1.bf16.msra.mxu0 %v260
      %278 = vmatprep.subr.bf16.mxu0 0
      %279 = vmatpush1.bf16.msra.mxu0 %v261
      %280 = vmatprep.subr.bf16.mxu0 0
      %281 = vmatpush1.bf16.msra.mxu0 %v262
      %282 = vmatprep.subr.bf16.mxu0 0
      %283 = vmatpush1.bf16.msra.mxu0 %v263
      %284 = vmatprep.subr.bf16.mxu0 0
      %285 = vmatpush1.bf16.msra.mxu0 %v264
      %286 = vmatprep.subr.bf16.mxu0 0
      %287 = vmatpush1.bf16.msra.mxu0 %v265
      %288 = vmatprep.subr.bf16.mxu0 0
      %289 = vmatpush1.bf16.msra.mxu0 %v266
      %290 = vmatprep.subr.bf16.mxu0 0
      %291 = vmatpush1.bf16.msra.mxu0 %v267
      %292 = vmatprep.subr.bf16.mxu0 0
      %293 = vmatpush1.bf16.msra.mxu0 0
      %294 = vmatprep.subr.bf16.mxu0 0
      %295 = vmatpush1.bf16.msra.mxu0 0
      %296 = vmatprep.subr.bf16.mxu0 0
      %297 = vmatpush1.bf16.msra.mxu0 0
      %298 = vmatprep.subr.bf16.mxu0 0
      %299 = vmatpush1.bf16.msra.mxu0 0
      %300 = vmatprep.subr.bf16.mxu0 0
      %301 = vmatpush1.bf16.msra.mxu0 0
      %302 = vmatprep.subr.bf16.mxu0 0
      %303 = vmatpush1.bf16.msra.mxu0 0
      %304 = vmatprep.subr.bf16.mxu0 0
      %305 = vmatpush1.bf16.msra.mxu0 0
      %306 = vmatprep.subr.bf16.mxu0 0
      %307 = vmatpush1.bf16.msra.mxu0 0
      %308 = vmatprep.mubr.bf16.mxu0 0
      %309 = vmatmul.mubr.bf16.gmra.mrb[0].mxu0 %v212
      %v310 = vpop.f32.mrb[0].mxu0
      %v311 = vadd.f32 0.0, %v310
      %v312 = vpop.f32.mrb[0].mxu0
      %v313 = vpop.f32.mrb[0].mxu0
      %v314 = vadd.f32 0.0, %v313
      %v315 = vpop.f32.mrb[0].mxu0
      %316 = vmatprep.mubr.bf16.mxu0 0
      %317 = vmatmul.mubr.bf16.gmra.mrb[0].mxu0 %v213
      %v318 = vpop.f32.mrb[0].mxu0
      %v319 = vadd.f32 0.0, %v318
      %v320 = vpop.f32.mrb[0].mxu0
      %v321 = vpop.f32.mrb[0].mxu0
      %v322 = vadd.f32 0.0, %v321
      %v323 = vpop.f32.mrb[0].mxu0
      %324 = vmatprep.mubr.bf16.mxu0 0
      %325 = vmatmul.mubr.bf16.gmra.mrb[0].mxu0 %v214
      %v326 = vpop.f32.mrb[0].mxu0
      %v327 = vadd.f32 0.0, %v326
      %v328 = vpop.f32.mrb[0].mxu0
      %v329 = vpop.f32.mrb[0].mxu0
      %v330 = vadd.f32 0.0, %v329
      %v331 = vpop.f32.mrb[0].mxu0
      %332 = vmatprep.mubr.bf16.mxu0 0
      %333 = vmatmul.mubr.bf16.gmra.mrb[0].mxu0 %v215
      %v334 = vpop.f32.mrb[0].mxu0
      %v335 = vadd.f32 0.0, %v334
      %v336 = vpop.f32.mrb[0].mxu0
      %v337 = vpop.f32.mrb[0].mxu0
      %v338 = vadd.f32 0.0, %v337
      %v339 = vpop.f32.mrb[0].mxu0
      %340 = vmatprep.mubr.bf16.mxu0 0
      %341 = vmatmul.mubr.bf16.gmra.mrb[0].mxu0 %v216
      %v342 = vpop.f32.mrb[0].mxu0
      %v343 = vadd.f32 0.0, %v342
      %v344 = vpop.f32.mrb[0].mxu0
      %v345 = vpop.f32.mrb[0].mxu0
      %v346 = vadd.f32 0.0, %v345
      %v347 = vpop.f32.mrb[0].mxu0
      %348 = vmatprep.mubr.bf16.mxu0 0
      %349 = vmatmul.mubr.bf16.gmra.mrb[0].mxu0 %v217
      %v350 = vpop.f32.mrb[0].mxu0
      %v351 = vadd.f32 0.0, %v350
      %v352 = vpop.f32.mrb[0].mxu0
      %v353 = vpop.f32.mrb[0].mxu0
      %v354 = vadd.f32 0.0, %v353
      %v355 = vpop.f32.mrb[0].mxu0
      %356 = vmatprep.mubr.bf16.mxu0 0
      %357 = vmatmul.mubr.bf16.gmra.mrb[0].mxu0 %v218
      %v358 = vpop.f32.mrb[0].mxu0
      %v359 = vadd.f32 0.0, %v358
      %v360 = vpop.f32.mrb[0].mxu0
      %v361 = vpop.f32.mrb[0].mxu0
      %v362 = vadd.f32 0.0, %v361
      %v363 = vpop.f32.mrb[0].mxu0
      %364 = vmatprep.mubr.bf16.mxu0 0
      %365 = vmatmul.mubr.bf16.gmra.mrb[0].mxu0 %v219
      %v366 = vpop.f32.mrb[0].mxu0
      %v367 = vadd.f32 0.0, %v366
      %v368 = vpop.f32.mrb[0].mxu0
      %v369 = vpop.f32.mrb[0].mxu0
      %v370 = vadd.f32 0.0, %v369
      %v371 = vpop.f32.mrb[0].mxu0
      %372 = vdwg.mxu0
      %v373 = vpack.c.bf16 %v314, %v311
      %v374 = vpack.c.bf16 %v322, %v319
      %v375 = vpack.c.bf16 %v330, %v327
      %v376 = vpack.c.bf16 %v338, %v335
      %v377 = vpack.c.bf16 %v346, %v343
      %v378 = vpack.c.bf16 %v354, %v351
      %v379 = vpack.c.bf16 %v362, %v359
      %v380 = vpack.c.bf16 %v370, %v367
      %v389 = vunpack.c.l.b16 %v373
      %v390 = vunpack.c.h.b16 %v373
      %v391 = vunpack.c.l.b16 %v374
      %v392 = vunpack.c.h.b16 %v374
      %v393 = vunpack.c.l.b16 %v375
      %v394 = vunpack.c.h.b16 %v375
      %v395 = vunpack.c.l.b16 %v376
      %v396 = vunpack.c.h.b16 %v376
      %v397 = vunpack.c.l.b16 %v377
      %v398 = vunpack.c.h.b16 %v377
      %v399 = vunpack.c.l.b16 %v378
      %v400 = vunpack.c.h.b16 %v378
      %v401 = vunpack.c.l.b16 %v379
      %v402 = vunpack.c.h.b16 %v379
      %v403 = vunpack.c.l.b16 %v380
      %v404 = vunpack.c.h.b16 %v380
      %v405 = vpack.c.b16 %v389, %v389
      %v406 = vpack.c.b16 %v390, %v390
      %v407 = vpack.c.b16 %v391, %v391
      %v408 = vpack.c.b16 %v392, %v392
      %v409 = vpack.c.b16 %v393, %v393
      %v410 = vpack.c.b16 %v394, %v394
      %v411 = vpack.c.b16 %v395, %v395
      %v412 = vpack.c.b16 %v396, %v396
      %v413 = vpack.c.b16 %v397, %v397
      %v414 = vpack.c.b16 %v398, %v398
      %v415 = vpack.c.b16 %v399, %v399
      %v416 = vpack.c.b16 %v400, %v400
      %v417 = vpack.c.b16 %v401, %v401
      %v418 = vpack.c.b16 %v402, %v402
      %v419 = vpack.c.b16 %v403, %v403
      %v420 = vpack.c.b16 %v404, %v404
      %437 = vst [vmem:[%s145] sm:$0xf] %v405
      %438 = vst [vmem:[%s145 + $0x4] sm:$0xf] %v406
      %439 = vst [vmem:[%s145 + $0x8] sm:$0xf] %v407
      %440 = vst [vmem:[%s145 + $0xc] sm:$0xf] %v408
      %441 = vst [vmem:[%s145 + $0x10] sm:$0xf] %v409
      %442 = vst [vmem:[%s145 + $0x14] sm:$0xf] %v410
      %443 = vst [vmem:[%s145 + $0x18] sm:$0xf] %v411
      %444 = vst [vmem:[%s145 + $0x1c] sm:$0xf] %v412
      %445 = vst [vmem:[%s145 + $0x20] sm:$0xf] %v413
      %446 = vst [vmem:[%s145 + $0x24] sm:$0xf] %v414
      %447 = vst [vmem:[%s145 + $0x28] sm:$0xf] %v415
      %448 = vst [vmem:[%s145 + $0x2c] sm:$0xf] %v416
      %449 = vst [vmem:[%s145 + $0x30] sm:$0xf] %v417
      %450 = vst [vmem:[%s145 + $0x34] sm:$0xf] %v418
      %451 = vst [vmem:[%s145 + $0x38] sm:$0xf] %v419
      %452 = vst [vmem:[%s145 + $0x3c] sm:$0xf] %v420
      %s453 = smul.u32 16, %s13
      %p454 = scmp.lt.s32.totalorder %s453, 31
      %s455 = scalar_select %p454, %s453, 31
      %s456 = smul.addr %s455, 4
      %s457 = scalar_lea.vmem %s2, %s456
      // Predicated region
      $region29: #{gcn_second_forward.2} parent=27 // pred_check
        %p458 = pneg %p78
      $region30: #{gcn_second_forward.2} parent=27 // pred_check_branch
        %460 = sbr.rel (%p458) target = $region32
      $region31: #{gcn_second_forward.2} parent=27 // pred_region
        %s461 = smul.u32 16, %s13
      $region32: #{gcn_second_forward.2} parent=27 // pred_fallthru
        _
    $region28: #{gcn_second_forward.2} parent=5 // pred_fallthru
      _
    %p462 = scmp.le.s32.totalorder 2, %s8
    // Predicated region
    $region33: #{gcn_second_forward.2} parent=5 // pred_check
      %p463 = pneg %p462
    $region34: #{gcn_second_forward.2} parent=5 // pred_check_branch
      %465 = sbr.rel (%p463) target = $region36
    $region35: #{gcn_second_forward.2} parent=5 // pred_region
      %s466 = ssub.s32 %s8, 2
      // Predicated region
      $region37: #{gcn_second_forward.2} parent=35 // pred_check
        %p467 = pneg %p84
      $region38: #{gcn_second_forward.2} parent=35 // pred_check_branch
        %469 = sbr.rel (%p467) target = $region40
      $region39: #{gcn_second_forward.2} parent=35 // pred_region
        %s470 = smul.u32 16, %s14
        %p471 = scmp.lt.s32.totalorder %s470, 31
        %s472 = scalar_select %p471, %s470, 31
        %s473 = smul.addr %s472, 4
        %s474 = scalar_lea.vmem %s2, %s473
      $region40: #{gcn_second_forward.2} parent=35 // pred_fallthru
        _
    $region36: #{gcn_second_forward.2} parent=5 // pred_fallthru
      _
  $region6: #{gcn_second_forward.2} parent=0 // loop_footer
    %s12 = sadd.s32 1, %s8
  $region7: #{gcn_second_forward.2} parent=0 // loop_footer_branch
    %7 = sbr.rel target = $region3
  $region8: #{gcn_second_forward.2} parent=0 // loop_exit
    _

</llo_original>
